<compile_context>
chip_gen: v6e
topology: v6e:2x2x1
jax: 0.10.0
libtpu: 0.0.40
codegen_flags: <defaults>
</compile_context>

<pallas_src>
import numpy as np
import jax
import jax.numpy as jnp
from jax.experimental import pallas as pl
from jax.experimental.pallas import tpu as pltpu

# ----------------------------- problem sizes --------------------------------
B, C, H, W = 2, 4, 16, 16
POOL = 2        # TODO(synk): nn.AvgPool2d() in the original has no kernel_size (broken ctor); use 2.
UPSCALE = 2     # chosen to invert the pool; mode='bilinear' (the factory default).
SQ = C // 2     # Fire squeeze / expand planes (Fire(C, C//2, C//2, C//2))
LANE = 128

HW = H * W                      # 256 full-res pixels per channel
HPOOL = H // POOL               # 8   after avg-pool
HPAD = HPOOL + 4                # 12  after ReflectionPad2d(2)
HF1 = HPAD - 2                  # 10  after Fire1 expands
HF2 = HF1 - 2                   # 8   after Fire2 expands
P_PAD = HPAD * HPAD             # 144
P_F1 = HF1 * HF1                # 100
P_F2 = HF2 * HF2                # 64
PF1_PAD = LANE                  # Fire1 expand pixels padded 100 -> 128 lanes/block
PF2_PAD = LANE                  # Fire2 expand pixels padded 64  -> 128 lanes/block

SELU_SCALE = 1.0507009873554804934193349852946   # SELU(x)=scale*x for x>=0 (ReLU precedes it)
SIGMA_EPS = 1e-6

# -------------------- deterministic synthetic parameters --------------------
_rng = np.random.RandomState(0)

def _conv_w(cout, cin, k):
    fan_in = cin * k * k
    return (_rng.randn(cout, cin, k, k) * np.sqrt(2.0 / fan_in)).astype(np.float32)

def _conv_b(cout):
    return np.full((cout,), 0.1, dtype=np.float32)

def _fire_params():
    return dict(
        wsq=_conv_w(SQ, C, 1), bsq=_conv_b(SQ),
        we1=_conv_w(SQ, SQ, 1), be1=_conv_b(SQ),
        we3=_conv_w(SQ, SQ, 3), be3=_conv_b(SQ),
    )

FIRE1 = _fire_params()
FIRE2 = _fire_params()
# TODO(synk): the broken forward re-calls the `upsample(...)` factory (fresh random weights each
# call); here one deterministic upsample block is shared by the mu and sigma branches.
# TODO(synk): Dropout(p=0.25) is treated as eval-mode identity (deterministic kernel).

# ------------- spatial operators as small per-axis / per-channel matrices ----
def _avgpool_matrix(n, k):
    m = np.zeros((n, n // k), dtype=np.float32)
    for q in range(n // k):
        m[k * q:k * q + k, q] = 1.0 / k
    return m

def _reflect_pad_matrix(n, pad):
    srcs = [pad - i for i in range(pad)] + list(range(n)) + [n - 2 - i for i in range(pad)]
    m = np.zeros((n, n + 2 * pad), dtype=np.float32)
    for out_i, s in enumerate(srcs):
        m[s, out_i] = 1.0
    return m

def _bilinear_up_matrix(n, scale):
    # matches torch nn.Upsample(scale_factor=scale, mode='bilinear', align_corners=False)
    out_n = n * scale
    m = np.zeros((n, out_n), dtype=np.float32)
    for d in range(out_n):
        src = max((d + 0.5) / scale - 0.5, 0.0)
        f = int(np.floor(src)); frac = src - f
        f1 = min(f + 1, n - 1)
        m[f, d] += 1.0 - frac
        m[f1, d] += frac
    return m

def _crop_matrix(n):
    # center crop n x n -> (n-2) x (n-2), per axis
    m = np.zeros((n, n - 2), dtype=np.float32)
    for i in range(n - 2):
        m[i + 1, i] = 1.0
    return m

def _conv3_matrix(k3, n):
    # 'valid' 3x3 conv on an n x n plane -> (n-2) x (n-2), flattened row-major
    no = n - 2
    m = np.zeros((n * n, no * no), dtype=np.float32)
    for kh in range(3):
        for kw in range(3):
            w = float(k3[kh, kw])
            for r in range(no):
                for q in range(no):
                    m[(r + kh) * n + (q + kw), r * no + q] += w
    return m

def _fire_expand_matrices(params, n_in, rows_pad):
    """One (rows_pad, 2*SQ*128) matrix per squeeze channel c, mapping the
    flattened n_in x n_in plane of that channel to ALL Fire expand outputs,
    laid out as 128-lane blocks in torch-cat order [e1_0..e1_{SQ-1}, e3_0..].
    Only the first (n_in-2)^2 lanes of each block are real; padded rows/cols
    are zero so garbage in padded lanes never propagates."""
    n_out = n_in - 2
    p_in, p_out = n_in * n_in, n_out * n_out
    crop = np.kron(_crop_matrix(n_in), _crop_matrix(n_in))   # (p_in, p_out)
    mats = []
    for c in range(SQ):
        m = np.zeros((rows_pad, 2 * SQ * LANE), dtype=np.float32)
        for o in range(SQ):   # expand1x1 on the center crop x[:, :, 1:-1, 1:-1]
            m[:p_in, o * LANE:o * LANE + p_out] = params['we1'][o, c, 0, 0] * crop
        for o in range(SQ):   # expand3x3, padding=0 ('valid')
            m[:p_in, (SQ + o) * LANE:(SQ + o) * LANE + p_out] = \
                _conv3_matrix(params['we3'][o, c], n_in)
        mats.append(m)
    return mats

def _fire_expand_bias_row(params):
    return np.concatenate(
        [np.full((LANE,), params['be1'][o], np.float32) for o in range(SQ)]
        + [np.full((LANE,), params['be3'][o], np.float32) for o in range(SQ)])

def _build_constants():
    pool_m = _avgpool_matrix(H, POOL)                 # (16, 8)
    pad_m = _reflect_pad_matrix(HPOOL, 2)             # (8, 12)
    up_m = _bilinear_up_matrix(HPOOL, UPSCALE)        # (8, 16)

    pp = pool_m @ pad_m                               # avg-pool then reflect-pad, per axis
    kpp = np.kron(pp, pp)                             # (256, 144) both spatial axes
    kup = np.kron(up_m, up_m)                         # (64, 256)
    kup_pad = np.zeros((PF2_PAD, HW), dtype=np.float32)
    kup_pad[:P_F2, :] = kup                           # rows 64..127 zero (kill pad lanes)

    mf1 = _fire_expand_matrices(FIRE1, HPAD, P_PAD)   # 2 x (144, 512)
    mf2 = _fire_expand_matrices(FIRE2, HF1, PF1_PAD)  # 2 x (128, 512)
    bias_pack = np.stack([_fire_expand_bias_row(FIRE1),
                          _fire_expand_bias_row(FIRE2)])   # (2, 512) f32, one DMA

    mats = (kpp, mf1[0], mf1[1], mf2[0], mf2[1], kup_pad)
    return tuple(jnp.asarray(m, dtype=jnp.bfloat16) for m in mats) \
        + (jnp.asarray(bias_pack, dtype=jnp.float32),)

_CONSTS = _build_constants()      # ~0.7 MiB (bf16), VMEM-resident for the fused call

# ------------------------------- fused kernel --------------------------------
def _fused_kernel(x_ref, kpp_ref, mf1a_ref, mf1b_ref, mf2a_ref, mf2b_ref,
                  kup_ref, bias_ref, o_ref):
    # 1x1-conv (squeeze) weights / biases are trace-time literals: no DMA.
    wsq1 = FIRE1['wsq'][:, :, 0, 0]
    wsq2 = FIRE2['wsq'][:, :, 0, 0]
    bsq1, bsq2 = FIRE1['bsq'], FIRE2['bsq']

    def mm(act, w_ref):
        # bf16 LHS x bf16 weights, f32 accumulate on the MXU.
        return jnp.dot(act.astype(jnp.bfloat16), w_ref[...],
                       preferred_element_type=jnp.float32)

    def relu(v):
        return jnp.maximum(v, 0.0)

    def channel_mix(blocks, w_row, bias):
        # 1x1-conv channel mix as scalar VPU mul-adds (weights are literals).
        acc = float(w_row[0]) * blocks[0]
        for k in range(1, len(blocks)):
            acc = acc + float(w_row[k]) * blocks[k]
        return relu(acc + float(bias))

    def upsample_block(v):
        # v: (C*B, 256) f32, channel-major rows (row = c*B + b).
        # avg-pool(2) ∘ ReflectionPad2d(2), both axes fused into one matmul, M=8.
        t = mm(v, kpp_ref)                                        # (C*B, 144)
        t_blocks = [t[c * B:(c + 1) * B, :] for c in range(C)]
        # Fire1 squeeze (C -> SQ) + ReLU.
        s1 = [channel_mix(t_blocks, wsq1[o], bsq1[o]) for o in range(SQ)]   # (B, 144) each
        # Fire1 expands: crop-1x1 and valid-3x3, all output channels packed in
        # one matrix per squeeze channel -> L-layout (B, 4*128), 100 real lanes.
        cat1 = mm(s1[0], mf1a_ref) + mm(s1[1], mf1b_ref) + bias_ref[0:1, :]
        # Fire's trailing ReLU feeds SELU: SELU(x) == SELU_SCALE * x for x >= 0,
        # so the exp/alpha branch is dead.
        cat1 = SELU_SCALE * relu(cat1)
        blocks1 = [cat1[:, k * LANE:(k + 1) * LANE] for k in range(2 * SQ)]
        # Fire2 squeeze (C -> SQ) + ReLU.
        s2 = [channel_mix(blocks1, wsq2[o], bsq2[o]) for o in range(SQ)]    # (B, 128) each
        # Fire2 expands -> (B, 4*128), 64 real lanes per block.
        cat2 = relu(mm(s2[0], mf2a_ref) + mm(s2[1], mf2b_ref) + bias_ref[1:2, :])
        # Back to channels-on-sublanes (C*B, 128), then bilinear x2 upsample, M=8.
        upin = jnp.concatenate(
            [cat2[:, k * LANE:(k + 1) * LANE] for k in range(2 * SQ)], axis=0)
        return mm(upin, kup_ref)                                  # (C*B, 256)

    x = x_ref[...]                         # (C*B, 256) f32
    mu = upsample_block(x)                 # full-res local mean
    cen = x - mu
    sigma = upsample_block(cen * cen)      # full-res local "variance"

    # sigma >= 0 (squares through non-negative pool/pad/ReLU/bilinear weights),
    # so a one-sided clamp suffices.
    # TODO(synk): the original divides by an unguarded sigma; use approx=False
    # here if bit-closeness of the ~1/eps outliers matters.
    o_ref[...] = cen * pl.reciprocal(jnp.maximum(sigma, SIGMA_EPS), approx=True)

# --------------------------------- wrapper -----------------------------------
def _vmem_spec():
    return pl.BlockSpec(memory_space=pltpu.MemorySpace.VMEM)

@jax.jit
def _spatial_normalization_fused(x, consts):
    # channels on the sublane axis, channel-major rows: (C*B, H*W) = (8, 256)
    x_s = jnp.transpose(x.astype(jnp.float32), (1, 0, 2, 3)).reshape(C * B, HW)
    out = pl.pallas_call(
        _fused_kernel,
        out_shape=jax.ShapeDtypeStruct((C * B, HW), jnp.float32),
        in_specs=[_vmem_spec() for _ in range(1 + len(consts))],
        out_specs=_vmem_spec(),
        compiler_params=pltpu.CompilerParams(vmem_limit_bytes=8 * 1024 * 1024),
    )(x_s, *consts)
    return jnp.transpose(out.reshape(C, B, H, W), (1, 0, 2, 3))

def spatial_normalization(x):
    return _spatial_normalization_fused(x, _CONSTS)

# ----------------------------------- main -------------------------------------
if __name__ == "__main__":
    key = jax.random.PRNGKey(0)
    x = jax.random.normal(key, (B, C, H, W), dtype=jnp.float32)
    out = spatial_normalization(x)
    jax.block_until_ready(out)
    assert out.shape == (B, C, H, W)
    assert bool(jnp.all(jnp.isfinite(out)))
    print("KERNEL_OK")
</pallas_src>

<mosaic_0001>
module attributes {stable_mosaic.version = 11 : i64} {
  func.func @_fused_kernel(%arg0: memref<8x256xf32, #tpu.memory_space<vmem>>, %arg1: memref<256x144xbf16, #tpu.memory_space<vmem>>, %arg2: memref<144x512xbf16, #tpu.memory_space<vmem>>, %arg3: memref<144x512xbf16, #tpu.memory_space<vmem>>, %arg4: memref<128x512xbf16, #tpu.memory_space<vmem>>, %arg5: memref<128x512xbf16, #tpu.memory_space<vmem>>, %arg6: memref<128x256xbf16, #tpu.memory_space<vmem>>, %arg7: memref<2x512xf32, #tpu.memory_space<vmem>>, %arg8: memref<8x256xf32, #tpu.memory_space<vmem>>) attributes {dimension_semantics = [], scalar_prefetch = 0 : i64, scratch_operands = 0 : i64, tpu.core_type = #tpu.core_type<tc>} {
    %c0 = arith.constant 0 : index
    %c0_0 = arith.constant 0 : index
    %0 = vector.load %arg0[%c0, %c0_0] : memref<8x256xf32, #tpu.memory_space<vmem>>, vector<8x256xf32>
    %1 = arith.truncf %0 : vector<8x256xf32> to vector<8x256xbf16>
    %c0_1 = arith.constant 0 : index
    %c0_2 = arith.constant 0 : index
    %2 = vector.load %arg1[%c0_1, %c0_2] : memref<256x144xbf16, #tpu.memory_space<vmem>>, vector<256x144xbf16>
    %cst = arith.constant dense<0.000000e+00> : vector<8x144xf32>
    %3 = tpu.matmul %1, %2, %cst {dimension_numbers = #tpu.dot_dimension_numbers<[1], [0], [0], [1], [0, 0, 1, 1], [], []>} : vector<8x256xbf16>, vector<256x144xbf16>, vector<8x144xf32> -> vector<8x144xf32>
    %4 = vector.extract_strided_slice %3 {offsets = [0, 0], sizes = [2, 144], strides = [1, 1]} : vector<8x144xf32> to vector<2x144xf32>
    %5 = vector.extract_strided_slice %3 {offsets = [2, 0], sizes = [2, 144], strides = [1, 1]} : vector<8x144xf32> to vector<2x144xf32>
    %6 = vector.extract_strided_slice %3 {offsets = [4, 0], sizes = [2, 144], strides = [1, 1]} : vector<8x144xf32> to vector<2x144xf32>
    %7 = vector.extract_strided_slice %3 {offsets = [6, 0], sizes = [2, 144], strides = [1, 1]} : vector<8x144xf32> to vector<2x144xf32>
    %cst_3 = arith.constant 1.24737334 : f32
    %8 = vector.broadcast %cst_3 : f32 to vector<2x144xf32>
    %9 = arith.mulf %8, %4 : vector<2x144xf32>
    %cst_4 = arith.constant 0.282953888 : f32
    %10 = vector.broadcast %cst_4 : f32 to vector<2x144xf32>
    %11 = arith.mulf %10, %5 : vector<2x144xf32>
    %12 = arith.addf %9, %11 : vector<2x144xf32>
    %cst_5 = arith.constant 0.692072272 : f32
    %13 = vector.broadcast %cst_5 : f32 to vector<2x144xf32>
    %14 = arith.mulf %13, %6 : vector<2x144xf32>
    %15 = arith.addf %12, %14 : vector<2x144xf32>
    %cst_6 = arith.constant 1.58455074 : f32
    %16 = vector.broadcast %cst_6 : f32 to vector<2x144xf32>
    %17 = arith.mulf %16, %7 : vector<2x144xf32>
    %18 = arith.addf %15, %17 : vector<2x144xf32>
    %cst_7 = arith.constant 1.000000e-01 : f32
    %19 = vector.broadcast %cst_7 : f32 to vector<2x144xf32>
    %20 = arith.addf %18, %19 : vector<2x144xf32>
    %cst_8 = arith.constant 0.000000e+00 : f32
    %21 = vector.broadcast %cst_8 : f32 to vector<2x144xf32>
    %22 = arith.maximumf %20, %21 : vector<2x144xf32>
    %cst_9 = arith.constant 1.32056296 : f32
    %23 = vector.broadcast %cst_9 : f32 to vector<2x144xf32>
    %24 = arith.mulf %23, %4 : vector<2x144xf32>
    %cst_10 = arith.constant -0.691039801 : f32
    %25 = vector.broadcast %cst_10 : f32 to vector<2x144xf32>
    %26 = arith.mulf %25, %5 : vector<2x144xf32>
    %27 = arith.addf %24, %26 : vector<2x144xf32>
    %cst_11 = arith.constant 0.671813965 : f32
    %28 = vector.broadcast %cst_11 : f32 to vector<2x144xf32>
    %29 = arith.mulf %28, %6 : vector<2x144xf32>
    %30 = arith.addf %27, %29 : vector<2x144xf32>
    %cst_12 = arith.constant -0.107025705 : f32
    %31 = vector.broadcast %cst_12 : f32 to vector<2x144xf32>
    %32 = arith.mulf %31, %7 : vector<2x144xf32>
    %33 = arith.addf %30, %32 : vector<2x144xf32>
    %cst_13 = arith.constant 1.000000e-01 : f32
    %34 = vector.broadcast %cst_13 : f32 to vector<2x144xf32>
    %35 = arith.addf %33, %34 : vector<2x144xf32>
    %cst_14 = arith.constant 0.000000e+00 : f32
    %36 = vector.broadcast %cst_14 : f32 to vector<2x144xf32>
    %37 = arith.maximumf %35, %36 : vector<2x144xf32>
    %38 = arith.truncf %22 : vector<2x144xf32> to vector<2x144xbf16>
    %c0_15 = arith.constant 0 : index
    %c0_16 = arith.constant 0 : index
    %39 = vector.load %arg2[%c0_15, %c0_16] : memref<144x512xbf16, #tpu.memory_space<vmem>>, vector<144x512xbf16>
    %cst_17 = arith.constant dense<0.000000e+00> : vector<2x512xf32>
    %40 = tpu.matmul %38, %39, %cst_17 {dimension_numbers = #tpu.dot_dimension_numbers<[1], [0], [0], [1], [0, 0, 1, 1], [], []>} : vector<2x144xbf16>, vector<144x512xbf16>, vector<2x512xf32> -> vector<2x512xf32>
    %41 = arith.truncf %37 : vector<2x144xf32> to vector<2x144xbf16>
    %c0_18 = arith.constant 0 : index
    %c0_19 = arith.constant 0 : index
    %42 = vector.load %arg3[%c0_18, %c0_19] : memref<144x512xbf16, #tpu.memory_space<vmem>>, vector<144x512xbf16>
    %cst_20 = arith.constant dense<0.000000e+00> : vector<2x512xf32>
    %43 = tpu.matmul %41, %42, %cst_20 {dimension_numbers = #tpu.dot_dimension_numbers<[1], [0], [0], [1], [0, 0, 1, 1], [], []>} : vector<2x144xbf16>, vector<144x512xbf16>, vector<2x512xf32> -> vector<2x512xf32>
    %44 = arith.addf %40, %43 : vector<2x512xf32>
    %c0_21 = arith.constant 0 : index
    %c0_22 = arith.constant 0 : index
    %45 = vector.load %arg7[%c0_21, %c0_22] : memref<2x512xf32, #tpu.memory_space<vmem>>, vector<1x512xf32>
    %46 = vector.broadcast %45 : vector<1x512xf32> to vector<2x512xf32>
    %47 = arith.addf %44, %46 : vector<2x512xf32>
    %cst_23 = arith.constant 0.000000e+00 : f32
    %48 = vector.broadcast %cst_23 : f32 to vector<2x512xf32>
    %49 = arith.maximumf %47, %48 : vector<2x512xf32>
    %cst_24 = arith.constant 1.05070102 : f32
    %50 = vector.broadcast %cst_24 : f32 to vector<2x512xf32>
    %51 = arith.mulf %50, %49 : vector<2x512xf32>
    %52 = vector.extract_strided_slice %51 {offsets = [0, 0], sizes = [2, 128], strides = [1, 1]} : vector<2x512xf32> to vector<2x128xf32>
    %53 = vector.extract_strided_slice %51 {offsets = [0, 128], sizes = [2, 128], strides = [1, 1]} : vector<2x512xf32> to vector<2x128xf32>
    %54 = vector.extract_strided_slice %51 {offsets = [0, 256], sizes = [2, 128], strides = [1, 1]} : vector<2x512xf32> to vector<2x128xf32>
    %55 = vector.extract_strided_slice %51 {offsets = [0, 384], sizes = [2, 128], strides = [1, 1]} : vector<2x512xf32> to vector<2x128xf32>
    %cst_25 = arith.constant -1.14119816 : f32
    %56 = vector.broadcast %cst_25 : f32 to vector<2x128xf32>
    %57 = arith.mulf %56, %52 : vector<2x128xf32>
    %cst_26 = arith.constant -0.150430098 : f32
    %58 = vector.broadcast %cst_26 : f32 to vector<2x128xf32>
    %59 = arith.mulf %58, %53 : vector<2x128xf32>
    %60 = arith.addf %57, %59 : vector<2x128xf32>
    %cst_27 = arith.constant -0.633190453 : f32
    %61 = vector.broadcast %cst_27 : f32 to vector<2x128xf32>
    %62 = arith.mulf %61, %54 : vector<2x128xf32>
    %63 = arith.addf %60, %62 : vector<2x128xf32>
    %cst_28 = arith.constant 0.273581386 : f32
    %64 = vector.broadcast %cst_28 : f32 to vector<2x128xf32>
    %65 = arith.mulf %64, %55 : vector<2x128xf32>
    %66 = arith.addf %63, %65 : vector<2x128xf32>
    %cst_29 = arith.constant 1.000000e-01 : f32
    %67 = vector.broadcast %cst_29 : f32 to vector<2x128xf32>
    %68 = arith.addf %66, %67 : vector<2x128xf32>
    %cst_30 = arith.constant 0.000000e+00 : f32
    %69 = vector.broadcast %cst_30 : f32 to vector<2x128xf32>
    %70 = arith.maximumf %68, %69 : vector<2x128xf32>
    %cst_31 = arith.constant -0.361193776 : f32
    %71 = vector.broadcast %cst_31 : f32 to vector<2x128xf32>
    %72 = arith.mulf %71, %52 : vector<2x128xf32>
    %cst_32 = arith.constant -8.348330e-01 : f32
    %73 = vector.broadcast %cst_32 : f32 to vector<2x128xf32>
    %74 = arith.mulf %73, %53 : vector<2x128xf32>
    %75 = arith.addf %72, %74 : vector<2x128xf32>
    %cst_33 = arith.constant -0.0199278444 : f32
    %76 = vector.broadcast %cst_33 : f32 to vector<2x128xf32>
    %77 = arith.mulf %76, %54 : vector<2x128xf32>
    %78 = arith.addf %75, %77 : vector<2x128xf32>
    %cst_34 = arith.constant 0.302876383 : f32
    %79 = vector.broadcast %cst_34 : f32 to vector<2x128xf32>
    %80 = arith.mulf %79, %55 : vector<2x128xf32>
    %81 = arith.addf %78, %80 : vector<2x128xf32>
    %cst_35 = arith.constant 1.000000e-01 : f32
    %82 = vector.broadcast %cst_35 : f32 to vector<2x128xf32>
    %83 = arith.addf %81, %82 : vector<2x128xf32>
    %cst_36 = arith.constant 0.000000e+00 : f32
    %84 = vector.broadcast %cst_36 : f32 to vector<2x128xf32>
    %85 = arith.maximumf %83, %84 : vector<2x128xf32>
    %86 = arith.truncf %70 : vector<2x128xf32> to vector<2x128xbf16>
    %c0_37 = arith.constant 0 : index
    %c0_38 = arith.constant 0 : index
    %87 = vector.load %arg4[%c0_37, %c0_38] : memref<128x512xbf16, #tpu.memory_space<vmem>>, vector<128x512xbf16>
    %cst_39 = arith.constant dense<0.000000e+00> : vector<2x512xf32>
    %88 = tpu.matmul %86, %87, %cst_39 {dimension_numbers = #tpu.dot_dimension_numbers<[1], [0], [0], [1], [0, 0, 1, 1], [], []>} : vector<2x128xbf16>, vector<128x512xbf16>, vector<2x512xf32> -> vector<2x512xf32>
    %89 = arith.truncf %85 : vector<2x128xf32> to vector<2x128xbf16>
    %c0_40 = arith.constant 0 : index
    %c0_41 = arith.constant 0 : index
    %90 = vector.load %arg5[%c0_40, %c0_41] : memref<128x512xbf16, #tpu.memory_space<vmem>>, vector<128x512xbf16>
    %cst_42 = arith.constant dense<0.000000e+00> : vector<2x512xf32>
    %91 = tpu.matmul %89, %90, %cst_42 {dimension_numbers = #tpu.dot_dimension_numbers<[1], [0], [0], [1], [0, 0, 1, 1], [], []>} : vector<2x128xbf16>, vector<128x512xbf16>, vector<2x512xf32> -> vector<2x512xf32>
    %92 = arith.addf %88, %91 : vector<2x512xf32>
    %c1 = arith.constant 1 : index
    %c0_43 = arith.constant 0 : index
    %93 = vector.load %arg7[%c1, %c0_43] : memref<2x512xf32, #tpu.memory_space<vmem>>, vector<1x512xf32>
    %94 = vector.broadcast %93 : vector<1x512xf32> to vector<2x512xf32>
    %95 = arith.addf %92, %94 : vector<2x512xf32>
    %cst_44 = arith.constant 0.000000e+00 : f32
    %96 = vector.broadcast %cst_44 : f32 to vector<2x512xf32>
    %97 = arith.maximumf %95, %96 : vector<2x512xf32>
    %98 = vector.extract_strided_slice %97 {offsets = [0, 0], sizes = [2, 128], strides = [1, 1]} : vector<2x512xf32> to vector<2x128xf32>
    %99 = vector.extract_strided_slice %97 {offsets = [0, 128], sizes = [2, 128], strides = [1, 1]} : vector<2x512xf32> to vector<2x128xf32>
    %100 = vector.extract_strided_slice %97 {offsets = [0, 256], sizes = [2, 128], strides = [1, 1]} : vector<2x512xf32> to vector<2x128xf32>
    %101 = vector.extract_strided_slice %97 {offsets = [0, 384], sizes = [2, 128], strides = [1, 1]} : vector<2x512xf32> to vector<2x128xf32>
    %102 = tpu.concatenate %98, %99, %100, %101 in 0 : vector<2x128xf32>, vector<2x128xf32>, vector<2x128xf32>, vector<2x128xf32> -> vector<8x128xf32>
    %103 = arith.truncf %102 : vector<8x128xf32> to vector<8x128xbf16>
    %c0_45 = arith.constant 0 : index
    %c0_46 = arith.constant 0 : index
    %104 = vector.load %arg6[%c0_45, %c0_46] : memref<128x256xbf16, #tpu.memory_space<vmem>>, vector<128x256xbf16>
    %cst_47 = arith.constant dense<0.000000e+00> : vector<8x256xf32>
    %105 = tpu.matmul %103, %104, %cst_47 {dimension_numbers = #tpu.dot_dimension_numbers<[1], [0], [0], [1], [0, 0, 1, 1], [], []>} : vector<8x128xbf16>, vector<128x256xbf16>, vector<8x256xf32> -> vector<8x256xf32>
    %106 = arith.subf %0, %105 : vector<8x256xf32>
    %107 = arith.mulf %106, %106 : vector<8x256xf32>
    %108 = arith.truncf %107 : vector<8x256xf32> to vector<8x256xbf16>
    %c0_48 = arith.constant 0 : index
    %c0_49 = arith.constant 0 : index
    %109 = vector.load %arg1[%c0_48, %c0_49] : memref<256x144xbf16, #tpu.memory_space<vmem>>, vector<256x144xbf16>
    %cst_50 = arith.constant dense<0.000000e+00> : vector<8x144xf32>
    %110 = tpu.matmul %108, %109, %cst_50 {dimension_numbers = #tpu.dot_dimension_numbers<[1], [0], [0], [1], [0, 0, 1, 1], [], []>} : vector<8x256xbf16>, vector<256x144xbf16>, vector<8x144xf32> -> vector<8x144xf32>
    %111 = vector.extract_strided_slice %110 {offsets = [0, 0], sizes = [2, 144], strides = [1, 1]} : vector<8x144xf32> to vector<2x144xf32>
    %112 = vector.extract_strided_slice %110 {offsets = [2, 0], sizes = [2, 144], strides = [1, 1]} : vector<8x144xf32> to vector<2x144xf32>
    %113 = vector.extract_strided_slice %110 {offsets = [4, 0], sizes = [2, 144], strides = [1, 1]} : vector<8x144xf32> to vector<2x144xf32>
    %114 = vector.extract_strided_slice %110 {offsets = [6, 0], sizes = [2, 144], strides = [1, 1]} : vector<8x144xf32> to vector<2x144xf32>
    %cst_51 = arith.constant 1.24737334 : f32
    %115 = vector.broadcast %cst_51 : f32 to vector<2x144xf32>
    %116 = arith.mulf %115, %111 : vector<2x144xf32>
    %cst_52 = arith.constant 0.282953888 : f32
    %117 = vector.broadcast %cst_52 : f32 to vector<2x144xf32>
    %118 = arith.mulf %117, %112 : vector<2x144xf32>
    %119 = arith.addf %116, %118 : vector<2x144xf32>
    %cst_53 = arith.constant 0.692072272 : f32
    %120 = vector.broadcast %cst_53 : f32 to vector<2x144xf32>
    %121 = arith.mulf %120, %113 : vector<2x144xf32>
    %122 = arith.addf %119, %121 : vector<2x144xf32>
    %cst_54 = arith.constant 1.58455074 : f32
    %123 = vector.broadcast %cst_54 : f32 to vector<2x144xf32>
    %124 = arith.mulf %123, %114 : vector<2x144xf32>
    %125 = arith.addf %122, %124 : vector<2x144xf32>
    %cst_55 = arith.constant 1.000000e-01 : f32
    %126 = vector.broadcast %cst_55 : f32 to vector<2x144xf32>
    %127 = arith.addf %125, %126 : vector<2x144xf32>
    %cst_56 = arith.constant 0.000000e+00 : f32
    %128 = vector.broadcast %cst_56 : f32 to vector<2x144xf32>
    %129 = arith.maximumf %127, %128 : vector<2x144xf32>
    %cst_57 = arith.constant 1.32056296 : f32
    %130 = vector.broadcast %cst_57 : f32 to vector<2x144xf32>
    %131 = arith.mulf %130, %111 : vector<2x144xf32>
    %cst_58 = arith.constant -0.691039801 : f32
    %132 = vector.broadcast %cst_58 : f32 to vector<2x144xf32>
    %133 = arith.mulf %132, %112 : vector<2x144xf32>
    %134 = arith.addf %131, %133 : vector<2x144xf32>
    %cst_59 = arith.constant 0.671813965 : f32
    %135 = vector.broadcast %cst_59 : f32 to vector<2x144xf32>
    %136 = arith.mulf %135, %113 : vector<2x144xf32>
    %137 = arith.addf %134, %136 : vector<2x144xf32>
    %cst_60 = arith.constant -0.107025705 : f32
    %138 = vector.broadcast %cst_60 : f32 to vector<2x144xf32>
    %139 = arith.mulf %138, %114 : vector<2x144xf32>
    %140 = arith.addf %137, %139 : vector<2x144xf32>
    %cst_61 = arith.constant 1.000000e-01 : f32
    %141 = vector.broadcast %cst_61 : f32 to vector<2x144xf32>
    %142 = arith.addf %140, %141 : vector<2x144xf32>
    %cst_62 = arith.constant 0.000000e+00 : f32
    %143 = vector.broadcast %cst_62 : f32 to vector<2x144xf32>
    %144 = arith.maximumf %142, %143 : vector<2x144xf32>
    %145 = arith.truncf %129 : vector<2x144xf32> to vector<2x144xbf16>
    %c0_63 = arith.constant 0 : index
    %c0_64 = arith.constant 0 : index
    %146 = vector.load %arg2[%c0_63, %c0_64] : memref<144x512xbf16, #tpu.memory_space<vmem>>, vector<144x512xbf16>
    %cst_65 = arith.constant dense<0.000000e+00> : vector<2x512xf32>
    %147 = tpu.matmul %145, %146, %cst_65 {dimension_numbers = #tpu.dot_dimension_numbers<[1], [0], [0], [1], [0, 0, 1, 1], [], []>} : vector<2x144xbf16>, vector<144x512xbf16>, vector<2x512xf32> -> vector<2x512xf32>
    %148 = arith.truncf %144 : vector<2x144xf32> to vector<2x144xbf16>
    %c0_66 = arith.constant 0 : index
    %c0_67 = arith.constant 0 : index
    %149 = vector.load %arg3[%c0_66, %c0_67] : memref<144x512xbf16, #tpu.memory_space<vmem>>, vector<144x512xbf16>
    %cst_68 = arith.constant dense<0.000000e+00> : vector<2x512xf32>
    %150 = tpu.matmul %148, %149, %cst_68 {dimension_numbers = #tpu.dot_dimension_numbers<[1], [0], [0], [1], [0, 0, 1, 1], [], []>} : vector<2x144xbf16>, vector<144x512xbf16>, vector<2x512xf32> -> vector<2x512xf32>
    %151 = arith.addf %147, %150 : vector<2x512xf32>
    %c0_69 = arith.constant 0 : index
    %c0_70 = arith.constant 0 : index
    %152 = vector.load %arg7[%c0_69, %c0_70] : memref<2x512xf32, #tpu.memory_space<vmem>>, vector<1x512xf32>
    %153 = vector.broadcast %152 : vector<1x512xf32> to vector<2x512xf32>
    %154 = arith.addf %151, %153 : vector<2x512xf32>
    %cst_71 = arith.constant 0.000000e+00 : f32
    %155 = vector.broadcast %cst_71 : f32 to vector<2x512xf32>
    %156 = arith.maximumf %154, %155 : vector<2x512xf32>
    %cst_72 = arith.constant 1.05070102 : f32
    %157 = vector.broadcast %cst_72 : f32 to vector<2x512xf32>
    %158 = arith.mulf %157, %156 : vector<2x512xf32>
    %159 = vector.extract_strided_slice %158 {offsets = [0, 0], sizes = [2, 128], strides = [1, 1]} : vector<2x512xf32> to vector<2x128xf32>
    %160 = vector.extract_strided_slice %158 {offsets = [0, 128], sizes = [2, 128], strides = [1, 1]} : vector<2x512xf32> to vector<2x128xf32>
    %161 = vector.extract_strided_slice %158 {offsets = [0, 256], sizes = [2, 128], strides = [1, 1]} : vector<2x512xf32> to vector<2x128xf32>
    %162 = vector.extract_strided_slice %158 {offsets = [0, 384], sizes = [2, 128], strides = [1, 1]} : vector<2x512xf32> to vector<2x128xf32>
    %cst_73 = arith.constant -1.14119816 : f32
    %163 = vector.broadcast %cst_73 : f32 to vector<2x128xf32>
    %164 = arith.mulf %163, %159 : vector<2x128xf32>
    %cst_74 = arith.constant -0.150430098 : f32
    %165 = vector.broadcast %cst_74 : f32 to vector<2x128xf32>
    %166 = arith.mulf %165, %160 : vector<2x128xf32>
    %167 = arith.addf %164, %166 : vector<2x128xf32>
    %cst_75 = arith.constant -0.633190453 : f32
    %168 = vector.broadcast %cst_75 : f32 to vector<2x128xf32>
    %169 = arith.mulf %168, %161 : vector<2x128xf32>
    %170 = arith.addf %167, %169 : vector<2x128xf32>
    %cst_76 = arith.constant 0.273581386 : f32
    %171 = vector.broadcast %cst_76 : f32 to vector<2x128xf32>
    %172 = arith.mulf %171, %162 : vector<2x128xf32>
    %173 = arith.addf %170, %172 : vector<2x128xf32>
    %cst_77 = arith.constant 1.000000e-01 : f32
    %174 = vector.broadcast %cst_77 : f32 to vector<2x128xf32>
    %175 = arith.addf %173, %174 : vector<2x128xf32>
    %cst_78 = arith.constant 0.000000e+00 : f32
    %176 = vector.broadcast %cst_78 : f32 to vector<2x128xf32>
    %177 = arith.maximumf %175, %176 : vector<2x128xf32>
    %cst_79 = arith.constant -0.361193776 : f32
    %178 = vector.broadcast %cst_79 : f32 to vector<2x128xf32>
    %179 = arith.mulf %178, %159 : vector<2x128xf32>
    %cst_80 = arith.constant -8.348330e-01 : f32
    %180 = vector.broadcast %cst_80 : f32 to vector<2x128xf32>
    %181 = arith.mulf %180, %160 : vector<2x128xf32>
    %182 = arith.addf %179, %181 : vector<2x128xf32>
    %cst_81 = arith.constant -0.0199278444 : f32
    %183 = vector.broadcast %cst_81 : f32 to vector<2x128xf32>
    %184 = arith.mulf %183, %161 : vector<2x128xf32>
    %185 = arith.addf %182, %184 : vector<2x128xf32>
    %cst_82 = arith.constant 0.302876383 : f32
    %186 = vector.broadcast %cst_82 : f32 to vector<2x128xf32>
    %187 = arith.mulf %186, %162 : vector<2x128xf32>
    %188 = arith.addf %185, %187 : vector<2x128xf32>
    %cst_83 = arith.constant 1.000000e-01 : f32
    %189 = vector.broadcast %cst_83 : f32 to vector<2x128xf32>
    %190 = arith.addf %188, %189 : vector<2x128xf32>
    %cst_84 = arith.constant 0.000000e+00 : f32
    %191 = vector.broadcast %cst_84 : f32 to vector<2x128xf32>
    %192 = arith.maximumf %190, %191 : vector<2x128xf32>
    %193 = arith.truncf %177 : vector<2x128xf32> to vector<2x128xbf16>
    %c0_85 = arith.constant 0 : index
    %c0_86 = arith.constant 0 : index
    %194 = vector.load %arg4[%c0_85, %c0_86] : memref<128x512xbf16, #tpu.memory_space<vmem>>, vector<128x512xbf16>
    %cst_87 = arith.constant dense<0.000000e+00> : vector<2x512xf32>
    %195 = tpu.matmul %193, %194, %cst_87 {dimension_numbers = #tpu.dot_dimension_numbers<[1], [0], [0], [1], [0, 0, 1, 1], [], []>} : vector<2x128xbf16>, vector<128x512xbf16>, vector<2x512xf32> -> vector<2x512xf32>
    %196 = arith.truncf %192 : vector<2x128xf32> to vector<2x128xbf16>
    %c0_88 = arith.constant 0 : index
    %c0_89 = arith.constant 0 : index
    %197 = vector.load %arg5[%c0_88, %c0_89] : memref<128x512xbf16, #tpu.memory_space<vmem>>, vector<128x512xbf16>
    %cst_90 = arith.constant dense<0.000000e+00> : vector<2x512xf32>
    %198 = tpu.matmul %196, %197, %cst_90 {dimension_numbers = #tpu.dot_dimension_numbers<[1], [0], [0], [1], [0, 0, 1, 1], [], []>} : vector<2x128xbf16>, vector<128x512xbf16>, vector<2x512xf32> -> vector<2x512xf32>
    %199 = arith.addf %195, %198 : vector<2x512xf32>
    %c1_91 = arith.constant 1 : index
    %c0_92 = arith.constant 0 : index
    %200 = vector.load %arg7[%c1_91, %c0_92] : memref<2x512xf32, #tpu.memory_space<vmem>>, vector<1x512xf32>
    %201 = vector.broadcast %200 : vector<1x512xf32> to vector<2x512xf32>
    %202 = arith.addf %199, %201 : vector<2x512xf32>
    %cst_93 = arith.constant 0.000000e+00 : f32
    %203 = vector.broadcast %cst_93 : f32 to vector<2x512xf32>
    %204 = arith.maximumf %202, %203 : vector<2x512xf32>
    %205 = vector.extract_strided_slice %204 {offsets = [0, 0], sizes = [2, 128], strides = [1, 1]} : vector<2x512xf32> to vector<2x128xf32>
    %206 = vector.extract_strided_slice %204 {offsets = [0, 128], sizes = [2, 128], strides = [1, 1]} : vector<2x512xf32> to vector<2x128xf32>
    %207 = vector.extract_strided_slice %204 {offsets = [0, 256], sizes = [2, 128], strides = [1, 1]} : vector<2x512xf32> to vector<2x128xf32>
    %208 = vector.extract_strided_slice %204 {offsets = [0, 384], sizes = [2, 128], strides = [1, 1]} : vector<2x512xf32> to vector<2x128xf32>
    %209 = tpu.concatenate %205, %206, %207, %208 in 0 : vector<2x128xf32>, vector<2x128xf32>, vector<2x128xf32>, vector<2x128xf32> -> vector<8x128xf32>
    %210 = arith.truncf %209 : vector<8x128xf32> to vector<8x128xbf16>
    %c0_94 = arith.constant 0 : index
    %c0_95 = arith.constant 0 : index
    %211 = vector.load %arg6[%c0_94, %c0_95] : memref<128x256xbf16, #tpu.memory_space<vmem>>, vector<128x256xbf16>
    %cst_96 = arith.constant dense<0.000000e+00> : vector<8x256xf32>
    %212 = tpu.matmul %210, %211, %cst_96 {dimension_numbers = #tpu.dot_dimension_numbers<[1], [0], [0], [1], [0, 0, 1, 1], [], []>} : vector<8x128xbf16>, vector<128x256xbf16>, vector<8x256xf32> -> vector<8x256xf32>
    %cst_97 = arith.constant 9.99999997E-7 : f32
    %213 = vector.broadcast %cst_97 : f32 to vector<8x256xf32>
    %214 = arith.maximumf %212, %213 : vector<8x256xf32>
    %215 = tpu.reciprocal %214 {approx = true} : vector<8x256xf32> -> vector<8x256xf32>
    %216 = arith.mulf %106, %215 : vector<8x256xf32>
    %c0_98 = arith.constant 0 : index
    %c0_99 = arith.constant 0 : index
    %217 = vector.load %arg8[%c0_98, %c0_99] : memref<8x256xf32, #tpu.memory_space<vmem>>, vector<8x256xf32>
    tpu.vector_store %arg8[%c0_98, %c0_99], %216 {strides = array<i32>} : memref<8x256xf32, #tpu.memory_space<vmem>>, vector<8x256xf32>,
    return
  }
}

</mosaic_0001>

<llo_original>
// kernel: _spatial_normalization_fused.1
$region0: #{_spatial_normalization_fused.1}
  #allocation0 [shape = 'u32[]', space=smem, size = 0x4, offset = 0x4, fixed_abs, tag = 'smem constant byte address 0x4 - core index']
  #allocation1 [shape = 'u32[144,128]{1,0:T(1,128)}', space=vmem, size = 0x12000, scoped, tag = 'internal scratch']
  %s0 = inlined_call_operand.vmem [shape: f32[8,256], index: 0, kind: input, shape index: {}]
  %s1 = inlined_call_operand.vmem [shape: bf16[256,144], index: 1, kind: input, shape index: {}]
  %s2 = inlined_call_operand.vmem [shape: bf16[144,512], index: 2, kind: input, shape index: {}]
  %s3 = inlined_call_operand.vmem [shape: bf16[144,512], index: 3, kind: input, shape index: {}]
  %s4 = inlined_call_operand.hbm [shape: bf16[128,512], index: 4, kind: input, shape index: {}]
  %s5 = inlined_call_operand.hbm [shape: bf16[128,512], index: 5, kind: input, shape index: {}]
  %s6 = inlined_call_operand.hbm [shape: bf16[128,256], index: 6, kind: input, shape index: {}]
  %s7 = inlined_call_operand.vmem [shape: f32[2,512], index: 7, kind: input, shape index: {}]
  %s8 = inlined_call_operand.vmem [shape: f32[8,256], index: 8, kind: output, shape index: {}]
  %s9 = sld [smem:[#allocation0]]
  $region54: #{_spatial_normalization_fused.1} parent=0
    _
  %s11 = ssub.s32 1, %s9
  %s12 = scalar_select 0, %s11, %s9
  $region1: #{_spatial_normalization_fused.1} parent=0
    #allocation2 [shape = 'u8[131072]{0}', space=vmem, size = 0x20000, scoped, tag = 'input window, operand 4, single buffered']
    #allocation3 [shape = 's32[1]{0}', space=sflag, size = 0x4, scoped, tag = 'scoped memory for _spatial_normalization_fused.1']
    #allocation4 [shape = 'u8[131072]{0}', space=vmem, size = 0x20000, scoped, tag = 'input window, operand 5, single buffered']
    #allocation5 [shape = 's32[1]{0}', space=sflag, size = 0x4, scoped, tag = 'scoped memory for _spatial_normalization_fused.1']
    #allocation6 [shape = 'u8[65536]{0}', space=vmem, size = 0x10000, scoped, tag = 'input window, operand 6, single buffered']
    %13 = vsyncpa [#allocation3], 0
    %14 = vsyncpa [#allocation5], 0
    // Predicated region
    $region2: #{_spatial_normalization_fused.1} parent=1 // pred_check
      _
    $region3: #{_spatial_normalization_fused.1} parent=1 // pred_check_branch
      %16 = sbr.rel (0) target = $region5
    $region4: #{_spatial_normalization_fused.1} parent=1 // pred_region
      _
    $region5: #{_spatial_normalization_fused.1} parent=1 // pred_fallthru
      _
    // Predicated region
    $region6: #{_spatial_normalization_fused.1} parent=1 // pred_check
      _
    $region7: #{_spatial_normalization_fused.1} parent=1 // pred_check_branch
      %18 = sbr.rel (0) target = $region9
    $region8: #{_spatial_normalization_fused.1} parent=1 // pred_region
      _
    $region9: #{_spatial_normalization_fused.1} parent=1 // pred_fallthru
      _
    // Predicated region
    $region10: #{_spatial_normalization_fused.1} parent=1 // pred_check
      _
    $region11: #{_spatial_normalization_fused.1} parent=1 // pred_check_branch
      %20 = sbr.rel (0) target = $region13
    $region12: #{_spatial_normalization_fused.1} parent=1 // pred_region
      _
    $region13: #{_spatial_normalization_fused.1} parent=1 // pred_fallthru
      _
    // Predicated region
    $region14: #{_spatial_normalization_fused.1} parent=1 // pred_check
      _
    $region15: #{_spatial_normalization_fused.1} parent=1 // pred_check_branch
      %22 = sbr.rel (0) target = $region17
    $region16: #{_spatial_normalization_fused.1} parent=1 // pred_region
      _
    $region17: #{_spatial_normalization_fused.1} parent=1 // pred_fallthru
      _
    // Predicated region
    $region18: #{_spatial_normalization_fused.1} parent=1 // pred_check
      _
    $region19: #{_spatial_normalization_fused.1} parent=1 // pred_check_branch
      %24 = sbr.rel (0) target = $region21
    $region20: #{_spatial_normalization_fused.1} parent=1 // pred_region
      %s26 = ssub.s32 4096, 4096
      %27 = vsyncadd [#allocation3], %s26
      %s28 = sshll.u32 [#allocation2], 4
      %s29 = int_to_ptr.vmem [resolvable:$true] %s28
      %34 = dma.hbm_to_vmem [thread:$0]  %s4, 4096, %s29, [#allocation3], 256, 256, 16
    $region21: #{_spatial_normalization_fused.1} parent=1 // pred_fallthru
      _
    // Predicated region
    $region22: #{_spatial_normalization_fused.1} parent=1 // pred_check
      _
    $region23: #{_spatial_normalization_fused.1} parent=1 // pred_check_branch
      %36 = sbr.rel (0) target = $region25
    $region24: #{_spatial_normalization_fused.1} parent=1 // pred_region
      %s38 = ssub.s32 4096, 4096
      %39 = vsyncadd [#allocation5], %s38
      %s40 = sshll.u32 [#allocation4], 4
      %s41 = int_to_ptr.vmem [resolvable:$true] %s40
      %46 = dma.hbm_to_vmem [thread:$0]  %s5, 4096, %s41, [#allocation5], 256, 256, 16
    $region25: #{_spatial_normalization_fused.1} parent=1 // pred_fallthru
      _
    // Predicated region
    $region26: #{_spatial_normalization_fused.1} parent=1 // pred_check
      _
    $region27: #{_spatial_normalization_fused.1} parent=1 // pred_check_branch
      %48 = sbr.rel (0) target = $region29
    $region28: #{_spatial_normalization_fused.1} parent=1 // pred_region
      %s50 = ssub.s32 2048, 2048
      %51 = vsyncadd [#allocation5], %s50
      %s52 = sshll.u32 [#allocation6], 4
      %s53 = int_to_ptr.vmem [resolvable:$true] %s52
      %58 = dma.hbm_to_vmem [thread:$0]  %s6, 2048, %s53, [#allocation5], 128, 128, 8
    $region29: #{_spatial_normalization_fused.1} parent=1 // pred_fallthru
      _
    // Predicated region
    $region30: #{_spatial_normalization_fused.1} parent=1 // pred_check
      _
    $region31: #{_spatial_normalization_fused.1} parent=1 // pred_check_branch
      %60 = sbr.rel (0) target = $region33
    $region32: #{_spatial_normalization_fused.1} parent=1 // pred_region
      _
    $region33: #{_spatial_normalization_fused.1} parent=1 // pred_fallthru
      _
    // Predicated region
    $region34: #{_spatial_normalization_fused.1} parent=1 // pred_check
      _
    $region35: #{_spatial_normalization_fused.1} parent=1 // pred_check_branch
      %62 = sbr.rel (0) target = $region37
    $region36: #{_spatial_normalization_fused.1} parent=1 // pred_region
      %63 = dma.done [#allocation3], 4096
    $region37: #{_spatial_normalization_fused.1} parent=1 // pred_fallthru
      _
    // Predicated region
    $region38: #{_spatial_normalization_fused.1} parent=1 // pred_check
      _
    $region39: #{_spatial_normalization_fused.1} parent=1 // pred_check_branch
      %65 = sbr.rel (0) target = $region41
    $region40: #{_spatial_normalization_fused.1} parent=1 // pred_region
      %66 = dma.done [#allocation5], 4096
    $region41: #{_spatial_normalization_fused.1} parent=1 // pred_fallthru
      _
    // Predicated region
    $region42: #{_spatial_normalization_fused.1} parent=1 // pred_check
      _
    $region43: #{_spatial_normalization_fused.1} parent=1 // pred_check_branch
      %68 = sbr.rel (0) target = $region45
    $region44: #{_spatial_normalization_fused.1} parent=1 // pred_region
      %69 = dma.done [#allocation5], 2048
    $region45: #{_spatial_normalization_fused.1} parent=1 // pred_fallthru
      _
    %v71 = vld [vmem:[%s0] sm:$0xff]
    %v72 = vld [vmem:[%s0 + $0x8] sm:$0xff]
    %v73 = vpack.c.bf16 %v71, %v71
    %v74 = vpack.c.bf16 %v72, %v72
    %v75 = vld [vmem:[%s1] sm:$0xff]
    %v76 = vld [vmem:[%s1 + $0x8] sm:$0xff]
    %v77 = vld [vmem:[%s1 + $0x10] sm:$0xff]
    %v78 = vld [vmem:[%s1 + $0x18] sm:$0xff]
    %v79 = vld [vmem:[%s1 + $0x20] sm:$0xff]
    %v80 = vld [vmem:[%s1 + $0x28] sm:$0xff]
    %v81 = vld [vmem:[%s1 + $0x30] sm:$0xff]
    %v82 = vld [vmem:[%s1 + $0x38] sm:$0xff]
    %v83 = vld [vmem:[%s1 + $0x40] sm:$0xff]
    %v84 = vld [vmem:[%s1 + $0x48] sm:$0xff]
    %v85 = vld [vmem:[%s1 + $0x50] sm:$0xff]
    %v86 = vld [vmem:[%s1 + $0x58] sm:$0xff]
    %v87 = vld [vmem:[%s1 + $0x60] sm:$0xff]
    %v88 = vld [vmem:[%s1 + $0x68] sm:$0xff]
    %v89 = vld [vmem:[%s1 + $0x70] sm:$0xff]
    %v90 = vld [vmem:[%s1 + $0x78] sm:$0xff]
    %v91 = vld [vmem:[%s1 + $0x80] sm:$0xff]
    %v92 = vld [vmem:[%s1 + $0x88] sm:$0xff]
    %v93 = vld [vmem:[%s1 + $0x90] sm:$0xff]
    %v94 = vld [vmem:[%s1 + $0x98] sm:$0xff]
    %v95 = vld [vmem:[%s1 + $0xa0] sm:$0xff]
    %v96 = vld [vmem:[%s1 + $0xa8] sm:$0xff]
    %v97 = vld [vmem:[%s1 + $0xb0] sm:$0xff]
    %v98 = vld [vmem:[%s1 + $0xb8] sm:$0xff]
    %v99 = vld [vmem:[%s1 + $0xc0] sm:$0xff]
    %v100 = vld [vmem:[%s1 + $0xc8] sm:$0xff]
    %v101 = vld [vmem:[%s1 + $0xd0] sm:$0xff]
    %v102 = vld [vmem:[%s1 + $0xd8] sm:$0xff]
    %v103 = vld [vmem:[%s1 + $0xe0] sm:$0xff]
    %v104 = vld [vmem:[%s1 + $0xe8] sm:$0xff]
    %v105 = vld [vmem:[%s1 + $0xf0] sm:$0xff]
    %v106 = vld [vmem:[%s1 + $0xf8] sm:$0xff]
    %v139 = vunpack.c.l.b16 %v75
    %v140 = vunpack.c.h.b16 %v75
    %v141 = vunpack.c.l.b16 %v76
    %v142 = vunpack.c.h.b16 %v76
    %v143 = vunpack.c.l.b16 %v77
    %v144 = vunpack.c.h.b16 %v77
    %v145 = vunpack.c.l.b16 %v78
    %v146 = vunpack.c.h.b16 %v78
    %v147 = vunpack.c.l.b16 %v79
    %v148 = vunpack.c.h.b16 %v79
    %v149 = vunpack.c.l.b16 %v80
    %v150 = vunpack.c.h.b16 %v80
    %v151 = vunpack.c.l.b16 %v81
    %v152 = vunpack.c.h.b16 %v81
    %v153 = vunpack.c.l.b16 %v82
    %v154 = vunpack.c.h.b16 %v82
    %v155 = vunpack.c.l.b16 %v83
    %v156 = vunpack.c.h.b16 %v83
    %v157 = vunpack.c.l.b16 %v84
    %v158 = vunpack.c.h.b16 %v84
    %v159 = vunpack.c.l.b16 %v85
    %v160 = vunpack.c.h.b16 %v85
    %v161 = vunpack.c.l.b16 %v86
    %v162 = vunpack.c.h.b16 %v86
    %v163 = vunpack.c.l.b16 %v87
    %v164 = vunpack.c.h.b16 %v87
    %v165 = vunpack.c.l.b16 %v88
    %v166 = vunpack.c.h.b16 %v88
    %v167 = vunpack.c.l.b16 %v89
    %v168 = vunpack.c.h.b16 %v89
    %v169 = vunpack.c.l.b16 %v90
    %v170 = vunpack.c.h.b16 %v90
    %v171 = vunpack.c.l.b16 %v91
    %v172 = vunpack.c.h.b16 %v91
    %v173 = vunpack.c.l.b16 %v92
    %v174 = vunpack.c.h.b16 %v92
    %v175 = vunpack.c.l.b16 %v93
    %v176 = vunpack.c.h.b16 %v93
    %v177 = vunpack.c.l.b16 %v94
    %v178 = vunpack.c.h.b16 %v94
    %v179 = vunpack.c.l.b16 %v95
    %v180 = vunpack.c.h.b16 %v95
    %v181 = vunpack.c.l.b16 %v96
    %v182 = vunpack.c.h.b16 %v96
    %v183 = vunpack.c.l.b16 %v97
    %v184 = vunpack.c.h.b16 %v97
    %v185 = vunpack.c.l.b16 %v98
    %v186 = vunpack.c.h.b16 %v98
    %v187 = vunpack.c.l.b16 %v99
    %v188 = vunpack.c.h.b16 %v99
    %v189 = vunpack.c.l.b16 %v100
    %v190 = vunpack.c.h.b16 %v100
    %v191 = vunpack.c.l.b16 %v101
    %v192 = vunpack.c.h.b16 %v101
    %v193 = vunpack.c.l.b16 %v102
    %v194 = vunpack.c.h.b16 %v102
    %v195 = vunpack.c.l.b16 %v103
    %v196 = vunpack.c.h.b16 %v103
    %v197 = vunpack.c.l.b16 %v104
    %v198 = vunpack.c.h.b16 %v104
    %v199 = vunpack.c.l.b16 %v105
    %v200 = vunpack.c.h.b16 %v105
    %v201 = vunpack.c.l.b16 %v106
    %v202 = vunpack.c.h.b16 %v106
    %v203 = vpack.c.b16 %v141, %v139
    %v204 = vpack.c.b16 %v142, %v140
    %v205 = vpack.c.b16 %v145, %v143
    %v206 = vpack.c.b16 %v146, %v144
    %v207 = vpack.c.b16 %v149, %v147
    %v208 = vpack.c.b16 %v150, %v148
    %v209 = vpack.c.b16 %v153, %v151
    %v210 = vpack.c.b16 %v154, %v152
    %v211 = vpack.c.b16 %v157, %v155
    %v212 = vpack.c.b16 %v158, %v156
    %v213 = vpack.c.b16 %v161, %v159
    %v214 = vpack.c.b16 %v162, %v160
    %v215 = vpack.c.b16 %v165, %v163
    %v216 = vpack.c.b16 %v166, %v164
    %v217 = vpack.c.b16 %v169, %v167
    %v218 = vpack.c.b16 %v170, %v168
    %v219 = vpack.c.b16 %v173, %v171
    %v220 = vpack.c.b16 %v174, %v172
    %v221 = vpack.c.b16 %v177, %v175
    %v222 = vpack.c.b16 %v178, %v176
    %v223 = vpack.c.b16 %v181, %v179
    %v224 = vpack.c.b16 %v182, %v180
    %v225 = vpack.c.b16 %v185, %v183
    %v226 = vpack.c.b16 %v186, %v184
    %v227 = vpack.c.b16 %v189, %v187
    %v228 = vpack.c.b16 %v190, %v188
    %v229 = vpack.c.b16 %v193, %v191
    %v230 = vpack.c.b16 %v194, %v192
    %v231 = vpack.c.b16 %v197, %v195
    %v232 = vpack.c.b16 %v198, %v196
    %v233 = vpack.c.b16 %v201, %v199
    %v234 = vpack.c.b16 %v202, %v200
    %267 = vmatprep.subr.bf16.mxu0 %v218
    %268 = vmatpush1.bf16.msra.mxu0 %v217
    %269 = vmatprep.subr.bf16.mxu0 %v216
    %270 = vmatpush1.bf16.msra.mxu0 %v215
    %271 = vmatprep.subr.bf16.mxu0 %v214
    %272 = vmatpush1.bf16.msra.mxu0 %v213
    %273 = vmatprep.subr.bf16.mxu0 %v212
    %274 = vmatpush1.bf16.msra.mxu0 %v211
    %275 = vmatprep.subr.bf16.mxu0 %v210
    %276 = vmatpush1.bf16.msra.mxu0 %v209
    %277 = vmatprep.subr.bf16.mxu0 %v208
    %278 = vmatpush1.bf16.msra.mxu0 %v207
    %279 = vmatprep.subr.bf16.mxu0 %v206
    %280 = vmatpush1.bf16.msra.mxu0 %v205
    %281 = vmatprep.subr.bf16.mxu0 %v204
    %282 = vmatpush1.bf16.msra.mxu0 %v203
    %283 = vmatprep.subr.bf16.mxu0 %v234
    %284 = vmatpush2.bf16.msra.mxu0 %v233
    %285 = vmatprep.subr.bf16.mxu0 %v232
    %286 = vmatpush2.bf16.msra.mxu0 %v231
    %287 = vmatprep.subr.bf16.mxu0 %v230
    %288 = vmatpush2.bf16.msra.mxu0 %v229
    %289 = vmatprep.subr.bf16.mxu0 %v228
    %290 = vmatpush2.bf16.msra.mxu0 %v227
    %291 = vmatprep.subr.bf16.mxu0 %v226
    %292 = vmatpush2.bf16.msra.mxu0 %v225
    %293 = vmatprep.subr.bf16.mxu0 %v224
    %294 = vmatpush2.bf16.msra.mxu0 %v223
    %295 = vmatprep.subr.bf16.mxu0 %v222
    %296 = vmatpush2.bf16.msra.mxu0 %v221
    %297 = vmatprep.subr.bf16.mxu0 %v220
    %298 = vmatpush2.bf16.msra.mxu0 %v219
    %299 = vmatprep.mubr.bf16.mxu0 %v74
    %300 = vmatmul.mubr.bf16.gmra.mxu0 %v73
    %v301 = vpop.f32.mrf.mxu0
    %v302 = vadd.f32 0.0, %v301
    %v303 = vpop.f32.mrf.mxu0
    %v304 = vadd.f32 0.0, %v303
    %v305 = vpop.f32.mrf.mxu0
    %v306 = vpop.f32.mrf.mxu0
    %307 = vdwg.mxu0
    %v308 = vmul.f32 %v302, 1.2473733
    %v309 = vmul.f32 %v304, 1.2473733
    %v310 = vmul.f32 %v302, 0.2829539
    %v311 = vmul.f32 %v304, 0.2829539
    %v314 = vrot.slane %v310, 2
    %v315 = vrot.slane %v311, 2
    %v318 = vadd.f32 %v308, %v314
    %v319 = vadd.f32 %v309, %v315
    %v320 = vmul.f32 %v302, 0.6920723
    %v321 = vmul.f32 %v304, 0.6920723
    %v324 = vrot.slane %v320, 4
    %v325 = vrot.slane %v321, 4
    %v328 = vadd.f32 %v318, %v324
    %v329 = vadd.f32 %v319, %v325
    %v330 = vmul.f32 %v302, 1.5845507
    %v331 = vmul.f32 %v304, 1.5845507
    %v334 = vrot.slane %v330, 6
    %v335 = vrot.slane %v331, 6
    %v338 = vadd.f32 %v328, %v334
    %v339 = vadd.f32 %v329, %v335
    %v340 = vadd.f32 %v338, 0.1
    %v341 = vadd.f32 %v339, 0.1
    %v342 = vmax.f32 %v340, 0.0
    %v343 = vmax.f32 %v341, 0.0
    %v344 = vmul.f32 %v302, 1.320563
    %v345 = vmul.f32 %v304, 1.320563
    %v346 = vmul.f32 %v302, -0.6910398
    %v347 = vmul.f32 %v304, -0.6910398
    %v350 = vrot.slane %v346, 2
    %v351 = vrot.slane %v347, 2
    %v354 = vadd.f32 %v344, %v350
    %v355 = vadd.f32 %v345, %v351
    %v356 = vmul.f32 %v302, 0.67181396
    %v357 = vmul.f32 %v304, 0.67181396
    %v360 = vrot.slane %v356, 4
    %v361 = vrot.slane %v357, 4
    %v364 = vadd.f32 %v354, %v360
    %v365 = vadd.f32 %v355, %v361
    %v366 = vmul.f32 %v302, -0.107025705
    %v367 = vmul.f32 %v304, -0.107025705
    %v370 = vrot.slane %v366, 6
    %v371 = vrot.slane %v367, 6
    %v374 = vadd.f32 %v364, %v370
    %v375 = vadd.f32 %v365, %v371
    %v376 = vadd.f32 %v374, 0.1
    %v377 = vadd.f32 %v375, 0.1
    %v378 = vmax.f32 %v376, 0.0
    %v379 = vmax.f32 %v377, 0.0
    %v380 = vpack.c.bf16 %v342, %v342
    %v381 = vpack.c.bf16 %v343, %v343
    %v382 = vld [vmem:[%s2] sm:$0xff]
    %v383 = vld [vmem:[%s2 + $0x8] sm:$0xff]
    %v384 = vld [vmem:[%s2 + $0x10] sm:$0xff]
    %v385 = vld [vmem:[%s2 + $0x18] sm:$0xff]
    %v386 = vld [vmem:[%s2 + $0x20] sm:$0xff]
    %v387 = vld [vmem:[%s2 + $0x28] sm:$0xff]
    %v388 = vld [vmem:[%s2 + $0x30] sm:$0xff]
    %v389 = vld [vmem:[%s2 + $0x38] sm:$0xff]
    %v390 = vld [vmem:[%s2 + $0x40] sm:$0xff]
    %v391 = vld [vmem:[%s2 + $0x48] sm:$0xff]
    %v392 = vld [vmem:[%s2 + $0x50] sm:$0xff]
    %v393 = vld [vmem:[%s2 + $0x58] sm:$0xff]
    %v394 = vld [vmem:[%s2 + $0x60] sm:$0xff]
    %v395 = vld [vmem:[%s2 + $0x68] sm:$0xff]
    %v396 = vld [vmem:[%s2 + $0x70] sm:$0xff]
    %v397 = vld [vmem:[%s2 + $0x78] sm:$0xff]
    %v398 = vld [vmem:[%s2 + $0x80] sm:$0xff]
    %v399 = vld [vmem:[%s2 + $0x88] sm:$0xff]
    %v400 = vld [vmem:[%s2 + $0x90] sm:$0xff]
    %v401 = vld [vmem:[%s2 + $0x98] sm:$0xff]
    %v402 = vld [vmem:[%s2 + $0xa0] sm:$0xff]
    %v403 = vld [vmem:[%s2 + $0xa8] sm:$0xff]
    %v404 = vld [vmem:[%s2 + $0xb0] sm:$0xff]
    %v405 = vld [vmem:[%s2 + $0xb8] sm:$0xff]
    %v406 = vld [vmem:[%s2 + $0xc0] sm:$0xff]
    %v407 = vld [vmem:[%s2 + $0xc8] sm:$0xff]
    %v408 = vld [vmem:[%s2 + $0xd0] sm:$0xff]
    %v409 = vld [vmem:[%s2 + $0xd8] sm:$0xff]
    %v410 = vld [vmem:[%s2 + $0xe0] sm:$0xff]
    %v411 = vld [vmem:[%s2 + $0xe8] sm:$0xff]
    %v412 = vld [vmem:[%s2 + $0xf0] sm:$0xff]
    %v413 = vld [vmem:[%s2 + $0xf8] sm:$0xff]
    %v414 = vld [vmem:[%s2 + $0x100] sm:$0xff]
    %v415 = vld [vmem:[%s2 + $0x108] sm:$0xff]
    %v416 = vld [vmem:[%s2 + $0x110] sm:$0xff]
    %v417 = vld [vmem:[%s2 + $0x118] sm:$0xff]
    %v418 = vpack.c.bf16 %v378, %v378
    %v419 = vpack.c.bf16 %v379, %v379
    %v420 = vld [vmem:[%s3] sm:$0xff]
    %v421 = vld [vmem:[%s3 + $0x8] sm:$0xff]
    %v422 = vld [vmem:[%s3 + $0x10] sm:$0xff]
    %v423 = vld [vmem:[%s3 + $0x18] sm:$0xff]
    %v424 = vld [vmem:[%s3 + $0x20] sm:$0xff]
    %v425 = vld [vmem:[%s3 + $0x28] sm:$0xff]
    %v426 = vld [vmem:[%s3 + $0x30] sm:$0xff]
    %v427 = vld [vmem:[%s3 + $0x38] sm:$0xff]
    %v428 = vld [vmem:[%s3 + $0x40] sm:$0xff]
    %v429 = vld [vmem:[%s3 + $0x48] sm:$0xff]
    %v430 = vld [vmem:[%s3 + $0x50] sm:$0xff]
    %v431 = vld [vmem:[%s3 + $0x58] sm:$0xff]
    %v432 = vld [vmem:[%s3 + $0x60] sm:$0xff]
    %v433 = vld [vmem:[%s3 + $0x68] sm:$0xff]
    %v434 = vld [vmem:[%s3 + $0x70] sm:$0xff]
    %v435 = vld [vmem:[%s3 + $0x78] sm:$0xff]
    %v436 = vld [vmem:[%s3 + $0x80] sm:$0xff]
    %v437 = vld [vmem:[%s3 + $0x88] sm:$0xff]
    %v438 = vld [vmem:[%s3 + $0x90] sm:$0xff]
    %v439 = vld [vmem:[%s3 + $0x98] sm:$0xff]
    %v440 = vld [vmem:[%s3 + $0xa0] sm:$0xff]
    %v441 = vld [vmem:[%s3 + $0xa8] sm:$0xff]
    %v442 = vld [vmem:[%s3 + $0xb0] sm:$0xff]
    %v443 = vld [vmem:[%s3 + $0xb8] sm:$0xff]
    %v444 = vld [vmem:[%s3 + $0xc0] sm:$0xff]
    %v445 = vld [vmem:[%s3 + $0xc8] sm:$0xff]
    %v446 = vld [vmem:[%s3 + $0xd0] sm:$0xff]
    %v447 = vld [vmem:[%s3 + $0xd8] sm:$0xff]
    %v448 = vld [vmem:[%s3 + $0xe0] sm:$0xff]
    %v449 = vld [vmem:[%s3 + $0xe8] sm:$0xff]
    %v450 = vld [vmem:[%s3 + $0xf0] sm:$0xff]
    %v451 = vld [vmem:[%s3 + $0xf8] sm:$0xff]
    %v452 = vld [vmem:[%s3 + $0x100] sm:$0xff]
    %v453 = vld [vmem:[%s3 + $0x108] sm:$0xff]
    %v454 = vld [vmem:[%s3 + $0x110] sm:$0xff]
    %v455 = vld [vmem:[%s3 + $0x118] sm:$0xff]
    %v492 = vunpack.c.l.b16 %v420
    %v493 = vunpack.c.h.b16 %v420
    %v494 = vunpack.c.l.b16 %v421
    %v495 = vunpack.c.h.b16 %v421
    %v496 = vunpack.c.l.b16 %v422
    %v497 = vunpack.c.h.b16 %v422
    %v498 = vunpack.c.l.b16 %v423
    %v499 = vunpack.c.h.b16 %v423
    %v500 = vunpack.c.l.b16 %v424
    %v501 = vunpack.c.h.b16 %v424
    %v502 = vunpack.c.l.b16 %v425
    %v503 = vunpack.c.h.b16 %v425
    %v504 = vunpack.c.l.b16 %v426
    %v505 = vunpack.c.h.b16 %v426
    %v506 = vunpack.c.l.b16 %v427
    %v507 = vunpack.c.h.b16 %v427
    %v508 = vunpack.c.l.b16 %v428
    %v509 = vunpack.c.h.b16 %v428
    %v510 = vunpack.c.l.b16 %v429
    %v511 = vunpack.c.h.b16 %v429
    %v512 = vunpack.c.l.b16 %v430
    %v513 = vunpack.c.h.b16 %v430
    %v514 = vunpack.c.l.b16 %v431
    %v515 = vunpack.c.h.b16 %v431
    %v516 = vunpack.c.l.b16 %v432
    %v517 = vunpack.c.h.b16 %v432
    %v518 = vunpack.c.l.b16 %v433
    %v519 = vunpack.c.h.b16 %v433
    %v520 = vunpack.c.l.b16 %v434
    %v521 = vunpack.c.h.b16 %v434
    %v522 = vunpack.c.l.b16 %v435
    %v523 = vunpack.c.h.b16 %v435
    %v524 = vunpack.c.l.b16 %v436
    %v525 = vunpack.c.h.b16 %v436
    %v526 = vunpack.c.l.b16 %v437
    %v527 = vunpack.c.h.b16 %v437
    %v528 = vunpack.c.l.b16 %v438
    %v529 = vunpack.c.h.b16 %v438
    %v530 = vunpack.c.l.b16 %v439
    %v531 = vunpack.c.h.b16 %v439
    %v532 = vunpack.c.l.b16 %v440
    %v533 = vunpack.c.h.b16 %v440
    %v534 = vunpack.c.l.b16 %v441
    %v535 = vunpack.c.h.b16 %v441
    %v536 = vunpack.c.l.b16 %v442
    %v537 = vunpack.c.h.b16 %v442
    %v538 = vunpack.c.l.b16 %v443
    %v539 = vunpack.c.h.b16 %v443
    %v540 = vunpack.c.l.b16 %v444
    %v541 = vunpack.c.h.b16 %v444
    %v542 = vunpack.c.l.b16 %v445
    %v543 = vunpack.c.h.b16 %v445
    %v544 = vunpack.c.l.b16 %v446
    %v545 = vunpack.c.h.b16 %v446
    %v546 = vunpack.c.l.b16 %v447
    %v547 = vunpack.c.h.b16 %v447
    %v548 = vunpack.c.l.b16 %v448
    %v549 = vunpack.c.h.b16 %v448
    %v550 = vunpack.c.l.b16 %v449
    %v551 = vunpack.c.h.b16 %v449
    %v552 = vunpack.c.l.b16 %v450
    %v553 = vunpack.c.h.b16 %v450
    %v554 = vunpack.c.l.b16 %v451
    %v555 = vunpack.c.h.b16 %v451
    %v556 = vunpack.c.l.b16 %v452
    %v557 = vunpack.c.h.b16 %v452
    %v558 = vunpack.c.l.b16 %v453
    %v559 = vunpack.c.h.b16 %v453
    %v560 = vunpack.c.l.b16 %v454
    %v561 = vunpack.c.h.b16 %v454
    %v562 = vunpack.c.l.b16 %v455
    %v563 = vunpack.c.h.b16 %v455
    %v564 = vpack.c.b16 %v496, %v492
    %v565 = vpack.c.b16 %v497, %v493
    %v566 = vpack.c.b16 %v498, %v494
    %v567 = vpack.c.b16 %v499, %v495
    %v568 = vpack.c.b16 %v504, %v500
    %v569 = vpack.c.b16 %v505, %v501
    %v570 = vpack.c.b16 %v506, %v502
    %v571 = vpack.c.b16 %v507, %v503
    %v572 = vpack.c.b16 %v512, %v508
    %v573 = vpack.c.b16 %v513, %v509
    %v574 = vpack.c.b16 %v514, %v510
    %v575 = vpack.c.b16 %v515, %v511
    %v576 = vpack.c.b16 %v520, %v516
    %v577 = vpack.c.b16 %v521, %v517
    %v578 = vpack.c.b16 %v522, %v518
    %v579 = vpack.c.b16 %v523, %v519
    %v580 = vpack.c.b16 %v528, %v524
    %v581 = vpack.c.b16 %v529, %v525
    %v582 = vpack.c.b16 %v530, %v526
    %v583 = vpack.c.b16 %v531, %v527
    %v584 = vpack.c.b16 %v536, %v532
    %v585 = vpack.c.b16 %v537, %v533
    %v586 = vpack.c.b16 %v538, %v534
    %v587 = vpack.c.b16 %v539, %v535
    %v588 = vpack.c.b16 %v544, %v540
    %v589 = vpack.c.b16 %v545, %v541
    %v590 = vpack.c.b16 %v546, %v542
    %v591 = vpack.c.b16 %v547, %v543
    %v592 = vpack.c.b16 %v552, %v548
    %v593 = vpack.c.b16 %v553, %v549
    %v594 = vpack.c.b16 %v554, %v550
    %v595 = vpack.c.b16 %v555, %v551
    %v596 = vpack.c.b16 %v560, %v556
    %v597 = vpack.c.b16 %v561, %v557
    %v598 = vpack.c.b16 %v562, %v558
    %v599 = vpack.c.b16 %v563, %v559
    %vm636 = vcmask 130048
    %v638 = vsel %vm636, %v419, 0
    %640 = vmatprep.subr.bf16.mxu0 %v593
    %641 = vmatpush1.bf16.msra.mxu0 %v592
    %642 = vmatprep.subr.bf16.mxu0 %v589
    %643 = vmatpush1.bf16.msra.mxu0 %v588
    %644 = vmatprep.subr.bf16.mxu0 %v585
    %645 = vmatpush1.bf16.msra.mxu0 %v584
    %646 = vmatprep.subr.bf16.mxu0 %v581
    %647 = vmatpush1.bf16.msra.mxu0 %v580
    %648 = vmatprep.subr.bf16.mxu0 %v577
    %649 = vmatpush1.bf16.msra.mxu0 %v576
    %650 = vmatprep.subr.bf16.mxu0 %v573
    %651 = vmatpush1.bf16.msra.mxu0 %v572
    %652 = vmatprep.subr.bf16.mxu0 %v569
    %653 = vmatpush1.bf16.msra.mxu0 %v568
    %654 = vmatprep.subr.bf16.mxu0 %v565
    %655 = vmatpush1.bf16.msra.mxu0 %v564
    %656 = vmatprep.subr.bf16.mxu0 0
    %657 = vmatpush2.bf16.msra.mxu0 0
    %658 = vmatprep.subr.bf16.mxu0 0
    %659 = vmatpush2.bf16.msra.mxu0 0
    %660 = vmatprep.subr.bf16.mxu0 0
    %661 = vmatpush2.bf16.msra.mxu0 0
    %662 = vmatprep.subr.bf16.mxu0 0
    %663 = vmatpush2.bf16.msra.mxu0 0
    %664 = vmatprep.subr.bf16.mxu0 0
    %665 = vmatpush2.bf16.msra.mxu0 0
    %666 = vmatprep.subr.bf16.mxu0 0
    %667 = vmatpush2.bf16.msra.mxu0 0
    %668 = vmatprep.subr.bf16.mxu0 0
    %669 = vmatpush2.bf16.msra.mxu0 0
    %670 = vmatprep.subr.bf16.mxu0 %v597
    %671 = vmatpush2.bf16.msra.mxu0 %v596
    %672 = vmatprep.mubr.bf16.mxu0 %v638
    %673 = vmatmul.mubr.bf16.gmra.mxu0 %v418
    %v674 = vpop.f32.mrf.mxu0
    %v675 = vadd.f32 0.0, %v674
    %v676 = vpop.f32.mrf.mxu0
    %v677 = vadd.f32 0.0, %v676
    %v678 = vpop.f32.mrf.mxu0
    %v679 = vpop.f32.mrf.mxu0
    %680 = vdwg.mxu0
    %681 = vmatprep.subr.bf16.mxu0 %v595
    %682 = vmatpush1.bf16.msra.mxu0 %v594
    %683 = vmatprep.subr.bf16.mxu0 %v591
    %684 = vmatpush1.bf16.msra.mxu0 %v590
    %685 = vmatprep.subr.bf16.mxu0 %v587
    %686 = vmatpush1.bf16.msra.mxu0 %v586
    %687 = vmatprep.subr.bf16.mxu0 %v583
    %688 = vmatpush1.bf16.msra.mxu0 %v582
    %689 = vmatprep.subr.bf16.mxu0 %v579
    %690 = vmatpush1.bf16.msra.mxu0 %v578
    %691 = vmatprep.subr.bf16.mxu0 %v575
    %692 = vmatpush1.bf16.msra.mxu0 %v574
    %693 = vmatprep.subr.bf16.mxu0 %v571
    %694 = vmatpush1.bf16.msra.mxu0 %v570
    %695 = vmatprep.subr.bf16.mxu0 %v567
    %696 = vmatpush1.bf16.msra.mxu0 %v566
    %697 = vmatprep.subr.bf16.mxu0 0
    %698 = vmatpush2.bf16.msra.mxu0 0
    %699 = vmatprep.subr.bf16.mxu0 0
    %700 = vmatpush2.bf16.msra.mxu0 0
    %701 = vmatprep.subr.bf16.mxu0 0
    %702 = vmatpush2.bf16.msra.mxu0 0
    %703 = vmatprep.subr.bf16.mxu0 0
    %704 = vmatpush2.bf16.msra.mxu0 0
    %705 = vmatprep.subr.bf16.mxu0 0
    %706 = vmatpush2.bf16.msra.mxu0 0
    %707 = vmatprep.subr.bf16.mxu0 0
    %708 = vmatpush2.bf16.msra.mxu0 0
    %709 = vmatprep.subr.bf16.mxu0 0
    %710 = vmatpush2.bf16.msra.mxu0 0
    %711 = vmatprep.subr.bf16.mxu0 %v599
    %712 = vmatpush2.bf16.msra.mxu0 %v598
    %713 = vmatprep.mubr.bf16.mxu0 %v638
    %714 = vmatmul.mubr.bf16.gmra.mxu0 %v418
    %v715 = vpop.f32.mrf.mxu0
    %v716 = vadd.f32 0.0, %v715
    %v717 = vpop.f32.mrf.mxu0
    %v718 = vadd.f32 0.0, %v717
    %v719 = vpop.f32.mrf.mxu0
    %v720 = vpop.f32.mrf.mxu0
    %721 = vdwg.mxu0
    %v758 = vunpack.c.l.b16 %v382
    %v759 = vunpack.c.h.b16 %v382
    %v760 = vunpack.c.l.b16 %v383
    %v761 = vunpack.c.h.b16 %v383
    %v762 = vunpack.c.l.b16 %v384
    %v763 = vunpack.c.h.b16 %v384
    %v764 = vunpack.c.l.b16 %v385
    %v765 = vunpack.c.h.b16 %v385
    %v766 = vunpack.c.l.b16 %v386
    %v767 = vunpack.c.h.b16 %v386
    %v768 = vunpack.c.l.b16 %v387
    %v769 = vunpack.c.h.b16 %v387
    %v770 = vunpack.c.l.b16 %v388
    %v771 = vunpack.c.h.b16 %v388
    %v772 = vunpack.c.l.b16 %v389
    %v773 = vunpack.c.h.b16 %v389
    %v774 = vunpack.c.l.b16 %v390
    %v775 = vunpack.c.h.b16 %v390
    %v776 = vunpack.c.l.b16 %v391
    %v777 = vunpack.c.h.b16 %v391
    %v778 = vunpack.c.l.b16 %v392
    %v779 = vunpack.c.h.b16 %v392
    %v780 = vunpack.c.l.b16 %v393
    %v781 = vunpack.c.h.b16 %v393
    %v782 = vunpack.c.l.b16 %v394
    %v783 = vunpack.c.h.b16 %v394
    %v784 = vunpack.c.l.b16 %v395
    %v785 = vunpack.c.h.b16 %v395
    %v786 = vunpack.c.l.b16 %v396
    %v787 = vunpack.c.h.b16 %v396
    %v788 = vunpack.c.l.b16 %v397
    %v789 = vunpack.c.h.b16 %v397
    %v790 = vunpack.c.l.b16 %v398
    %v791 = vunpack.c.h.b16 %v398
    %v792 = vunpack.c.l.b16 %v399
    %v793 = vunpack.c.h.b16 %v399
    %v794 = vunpack.c.l.b16 %v400
    %v795 = vunpack.c.h.b16 %v400
    %v796 = vunpack.c.l.b16 %v401
    %v797 = vunpack.c.h.b16 %v401
    %v798 = vunpack.c.l.b16 %v402
    %v799 = vunpack.c.h.b16 %v402
    %v800 = vunpack.c.l.b16 %v403
    %v801 = vunpack.c.h.b16 %v403
    %v802 = vunpack.c.l.b16 %v404
    %v803 = vunpack.c.h.b16 %v404
    %v804 = vunpack.c.l.b16 %v405
    %v805 = vunpack.c.h.b16 %v405
    %v806 = vunpack.c.l.b16 %v406
    %v807 = vunpack.c.h.b16 %v406
    %v808 = vunpack.c.l.b16 %v407
    %v809 = vunpack.c.h.b16 %v407
    %v810 = vunpack.c.l.b16 %v408
    %v811 = vunpack.c.h.b16 %v408
    %v812 = vunpack.c.l.b16 %v409
    %v813 = vunpack.c.h.b16 %v409
    %v814 = vunpack.c.l.b16 %v410
    %v815 = vunpack.c.h.b16 %v410
    %v816 = vunpack.c.l.b16 %v411
    %v817 = vunpack.c.h.b16 %v411
    %v818 = vunpack.c.l.b16 %v412
    %v819 = vunpack.c.h.b16 %v412
    %v820 = vunpack.c.l.b16 %v413
    %v821 = vunpack.c.h.b16 %v413
    %v822 = vunpack.c.l.b16 %v414
    %v823 = vunpack.c.h.b16 %v414
    %v824 = vunpack.c.l.b16 %v415
    %v825 = vunpack.c.h.b16 %v415
    %v826 = vunpack.c.l.b16 %v416
    %v827 = vunpack.c.h.b16 %v416
    %v828 = vunpack.c.l.b16 %v417
    %v829 = vunpack.c.h.b16 %v417
    %v830 = vpack.c.b16 %v762, %v758
    %v831 = vpack.c.b16 %v763, %v759
    %v832 = vpack.c.b16 %v764, %v760
    %v833 = vpack.c.b16 %v765, %v761
    %v834 = vpack.c.b16 %v770, %v766
    %v835 = vpack.c.b16 %v771, %v767
    %v836 = vpack.c.b16 %v772, %v768
    %v837 = vpack.c.b16 %v773, %v769
    %v838 = vpack.c.b16 %v778, %v774
    %v839 = vpack.c.b16 %v779, %v775
    %v840 = vpack.c.b16 %v780, %v776
    %v841 = vpack.c.b16 %v781, %v777
    %v842 = vpack.c.b16 %v786, %v782
    %v843 = vpack.c.b16 %v787, %v783
    %v844 = vpack.c.b16 %v788, %v784
    %v845 = vpack.c.b16 %v789, %v785
    %v846 = vpack.c.b16 %v794, %v790
    %v847 = vpack.c.b16 %v795, %v791
    %v848 = vpack.c.b16 %v796, %v792
    %v849 = vpack.c.b16 %v797, %v793
    %v850 = vpack.c.b16 %v802, %v798
    %v851 = vpack.c.b16 %v803, %v799
    %v852 = vpack.c.b16 %v804, %v800
    %v853 = vpack.c.b16 %v805, %v801
    %v854 = vpack.c.b16 %v810, %v806
    %v855 = vpack.c.b16 %v811, %v807
    %v856 = vpack.c.b16 %v812, %v808
    %v857 = vpack.c.b16 %v813, %v809
    %v858 = vpack.c.b16 %v818, %v814
    %v859 = vpack.c.b16 %v819, %v815
    %v860 = vpack.c.b16 %v820, %v816
    %v861 = vpack.c.b16 %v821, %v817
    %v862 = vpack.c.b16 %v826, %v822
    %v863 = vpack.c.b16 %v827, %v823
    %v864 = vpack.c.b16 %v828, %v824
    %v865 = vpack.c.b16 %v829, %v825
    %v903 = vsel %vm636, %v381, 0
    %905 = vmatprep.subr.bf16.mxu0 %v859
    %906 = vmatpush1.bf16.msra.mxu0 %v858
    %907 = vmatprep.subr.bf16.mxu0 %v855
    %908 = vmatpush1.bf16.msra.mxu0 %v854
    %909 = vmatprep.subr.bf16.mxu0 %v851
    %910 = vmatpush1.bf16.msra.mxu0 %v850
    %911 = vmatprep.subr.bf16.mxu0 %v847
    %912 = vmatpush1.bf16.msra.mxu0 %v846
    %913 = vmatprep.subr.bf16.mxu0 %v843
    %914 = vmatpush1.bf16.msra.mxu0 %v842
    %915 = vmatprep.subr.bf16.mxu0 %v839
    %916 = vmatpush1.bf16.msra.mxu0 %v838
    %917 = vmatprep.subr.bf16.mxu0 %v835
    %918 = vmatpush1.bf16.msra.mxu0 %v834
    %919 = vmatprep.subr.bf16.mxu0 %v831
    %920 = vmatpush1.bf16.msra.mxu0 %v830
    %921 = vmatprep.subr.bf16.mxu0 0
    %922 = vmatpush2.bf16.msra.mxu0 0
    %923 = vmatprep.subr.bf16.mxu0 0
    %924 = vmatpush2.bf16.msra.mxu0 0
    %925 = vmatprep.subr.bf16.mxu0 0
    %926 = vmatpush2.bf16.msra.mxu0 0
    %927 = vmatprep.subr.bf16.mxu0 0
    %928 = vmatpush2.bf16.msra.mxu0 0
    %929 = vmatprep.subr.bf16.mxu0 0
    %930 = vmatpush2.bf16.msra.mxu0 0
    %931 = vmatprep.subr.bf16.mxu0 0
    %932 = vmatpush2.bf16.msra.mxu0 0
    %933 = vmatprep.subr.bf16.mxu0 0
    %934 = vmatpush2.bf16.msra.mxu0 0
    %935 = vmatprep.subr.bf16.mxu0 %v863
    %936 = vmatpush2.bf16.msra.mxu0 %v862
    %937 = vmatprep.mubr.bf16.mxu0 %v903
    %938 = vmatmul.mubr.bf16.gmra.mxu0 %v380
    %v939 = vpop.f32.mrf.mxu0
    %v940 = vadd.f32 %v675, %v939
    %v941 = vpop.f32.mrf.mxu0
    %v942 = vadd.f32 %v677, %v941
    %v943 = vpop.f32.mrf.mxu0
    %v944 = vpop.f32.mrf.mxu0
    %945 = vdwg.mxu0
    %946 = vmatprep.subr.bf16.mxu0 %v861
    %947 = vmatpush1.bf16.msra.mxu0 %v860
    %948 = vmatprep.subr.bf16.mxu0 %v857
    %949 = vmatpush1.bf16.msra.mxu0 %v856
    %950 = vmatprep.subr.bf16.mxu0 %v853
    %951 = vmatpush1.bf16.msra.mxu0 %v852
    %952 = vmatprep.subr.bf16.mxu0 %v849
    %953 = vmatpush1.bf16.msra.mxu0 %v848
    %954 = vmatprep.subr.bf16.mxu0 %v845
    %955 = vmatpush1.bf16.msra.mxu0 %v844
    %956 = vmatprep.subr.bf16.mxu0 %v841
    %957 = vmatpush1.bf16.msra.mxu0 %v840
    %958 = vmatprep.subr.bf16.mxu0 %v837
    %959 = vmatpush1.bf16.msra.mxu0 %v836
    %960 = vmatprep.subr.bf16.mxu0 %v833
    %961 = vmatpush1.bf16.msra.mxu0 %v832
    %962 = vmatprep.subr.bf16.mxu0 0
    %963 = vmatpush2.bf16.msra.mxu0 0
    %964 = vmatprep.subr.bf16.mxu0 0
    %965 = vmatpush2.bf16.msra.mxu0 0
    %966 = vmatprep.subr.bf16.mxu0 0
    %967 = vmatpush2.bf16.msra.mxu0 0
    %968 = vmatprep.subr.bf16.mxu0 0
    %969 = vmatpush2.bf16.msra.mxu0 0
    %970 = vmatprep.subr.bf16.mxu0 0
    %971 = vmatpush2.bf16.msra.mxu0 0
    %972 = vmatprep.subr.bf16.mxu0 0
    %973 = vmatpush2.bf16.msra.mxu0 0
    %974 = vmatprep.subr.bf16.mxu0 0
    %975 = vmatpush2.bf16.msra.mxu0 0
    %976 = vmatprep.subr.bf16.mxu0 %v865
    %977 = vmatpush2.bf16.msra.mxu0 %v864
    %978 = vmatprep.mubr.bf16.mxu0 %v903
    %979 = vmatmul.mubr.bf16.gmra.mxu0 %v380
    %v980 = vpop.f32.mrf.mxu0
    %v981 = vadd.f32 %v716, %v980
    %v982 = vpop.f32.mrf.mxu0
    %v983 = vadd.f32 %v718, %v982
    %v984 = vpop.f32.mrf.mxu0
    %v985 = vpop.f32.mrf.mxu0
    %986 = vdwg.mxu0
    %v987 = vld [vmem:[%s7] ss:$2 sm:$0xf]
    %v989 = vlaneseq
    %v990 = vshrl.u32 %v989, 7
    %v991 = vsub.s32 0, %v990
    %v992 = vrot.slane %v987, %v991
    %v993 = vlaneseq
    %v994 = vshrl.u32 %v993, 7
    %v995 = vsub.s32 1, %v994
    %v996 = vrot.slane %v987, %v995
    %v997 = vlaneseq
    %v998 = vshrl.u32 %v997, 7
    %v999 = vsub.s32 2, %v998
    %v1000 = vrot.slane %v987, %v999
    %v1001 = vlaneseq
    %v1002 = vshrl.u32 %v1001, 7
    %v1003 = vsub.s32 3, %v1002
    %v1004 = vrot.slane %v987, %v1003
    %v1009 = vadd.f32 %v940, %v992
    %v1010 = vadd.f32 %v942, %v996
    %v1011 = vadd.f32 %v981, %v1000
    %v1012 = vadd.f32 %v983, %v1004
    %v1013 = vmax.f32 %v1009, 0.0
    %v1014 = vmax.f32 %v1010, 0.0
    %v1015 = vmax.f32 %v1011, 0.0
    %v1016 = vmax.f32 %v1012, 0.0
    %v1017 = vmul.f32 %v1013, 1.050701
    %v1018 = vmul.f32 %v1014, 1.050701
    %v1019 = vmul.f32 %v1015, 1.050701
    %v1020 = vmul.f32 %v1016, 1.050701
    %v1021 = vmul.f32 %v1017, -1.1411982
    %v1022 = vmul.f32 %v1018, -0.1504301
    %v1023 = vadd.f32 %v1021, %v1022
    %v1024 = vmul.f32 %v1019, -0.63319045
    %v1025 = vadd.f32 %v1023, %v1024
    %v1026 = vmul.f32 %v1020, 0.2735814
    %v1027 = vadd.f32 %v1025, %v1026
    %v1028 = vadd.f32 %v1027, 0.1
    %v1029 = vmax.f32 %v1028, 0.0
    %v1030 = vmul.f32 %v1017, -0.36119378
    %v1031 = vmul.f32 %v1018, -0.834833
    %v1032 = vadd.f32 %v1030, %v1031
    %v1033 = vmul.f32 %v1019, -0.019927844
    %v1034 = vadd.f32 %v1032, %v1033
    %v1035 = vmul.f32 %v1020, 0.30287638
    %v1036 = vadd.f32 %v1034, %v1035
    %v1037 = vadd.f32 %v1036, 0.1
    %v1038 = vmax.f32 %v1037, 0.0
    %v1039 = vpack.c.bf16 %v1029, %v1029
    %v1040 = vld [vmem:[#allocation2] sm:$0xff]
    %v1041 = vld [vmem:[#allocation2 + $0x8] sm:$0xff]
    %v1042 = vld [vmem:[#allocation2 + $0x10] sm:$0xff]
    %v1043 = vld [vmem:[#allocation2 + $0x18] sm:$0xff]
    %v1044 = vld [vmem:[#allocation2 + $0x20] sm:$0xff]
    %v1045 = vld [vmem:[#allocation2 + $0x28] sm:$0xff]
    %v1046 = vld [vmem:[#allocation2 + $0x30] sm:$0xff]
    %v1047 = vld [vmem:[#allocation2 + $0x38] sm:$0xff]
    %v1048 = vld [vmem:[#allocation2 + $0x40] sm:$0xff]
    %v1049 = vld [vmem:[#allocation2 + $0x48] sm:$0xff]
    %v1050 = vld [vmem:[#allocation2 + $0x50] sm:$0xff]
    %v1051 = vld [vmem:[#allocation2 + $0x58] sm:$0xff]
    %v1052 = vld [vmem:[#allocation2 + $0x60] sm:$0xff]
    %v1053 = vld [vmem:[#allocation2 + $0x68] sm:$0xff]
    %v1054 = vld [vmem:[#allocation2 + $0x70] sm:$0xff]
    %v1055 = vld [vmem:[#allocation2 + $0x78] sm:$0xff]
    %v1056 = vld [vmem:[#allocation2 + $0x80] sm:$0xff]
    %v1057 = vld [vmem:[#allocation2 + $0x88] sm:$0xff]
    %v1058 = vld [vmem:[#allocation2 + $0x90] sm:$0xff]
    %v1059 = vld [vmem:[#allocation2 + $0x98] sm:$0xff]
    %v1060 = vld [vmem:[#allocation2 + $0xa0] sm:$0xff]
    %v1061 = vld [vmem:[#allocation2 + $0xa8] sm:$0xff]
    %v1062 = vld [vmem:[#allocation2 + $0xb0] sm:$0xff]
    %v1063 = vld [vmem:[#allocation2 + $0xb8] sm:$0xff]
    %v1064 = vld [vmem:[#allocation2 + $0xc0] sm:$0xff]
    %v1065 = vld [vmem:[#allocation2 + $0xc8] sm:$0xff]
    %v1066 = vld [vmem:[#allocation2 + $0xd0] sm:$0xff]
    %v1067 = vld [vmem:[#allocation2 + $0xd8] sm:$0xff]
    %v1068 = vld [vmem:[#allocation2 + $0xe0] sm:$0xff]
    %v1069 = vld [vmem:[#allocation2 + $0xe8] sm:$0xff]
    %v1070 = vld [vmem:[#allocation2 + $0xf0] sm:$0xff]
    %v1071 = vld [vmem:[#allocation2 + $0xf8] sm:$0xff]
    %v1072 = vpack.c.bf16 %v1038, %v1038
    %v1073 = vld [vmem:[#allocation4] sm:$0xff]
    %v1074 = vld [vmem:[#allocation4 + $0x8] sm:$0xff]
    %v1075 = vld [vmem:[#allocation4 + $0x10] sm:$0xff]
    %v1076 = vld [vmem:[#allocation4 + $0x18] sm:$0xff]
    %v1077 = vld [vmem:[#allocation4 + $0x20] sm:$0xff]
    %v1078 = vld [vmem:[#allocation4 + $0x28] sm:$0xff]
    %v1079 = vld [vmem:[#allocation4 + $0x30] sm:$0xff]
    %v1080 = vld [vmem:[#allocation4 + $0x38] sm:$0xff]
    %v1081 = vld [vmem:[#allocation4 + $0x40] sm:$0xff]
    %v1082 = vld [vmem:[#allocation4 + $0x48] sm:$0xff]
    %v1083 = vld [vmem:[#allocation4 + $0x50] sm:$0xff]
    %v1084 = vld [vmem:[#allocation4 + $0x58] sm:$0xff]
    %v1085 = vld [vmem:[#allocation4 + $0x60] sm:$0xff]
    %v1086 = vld [vmem:[#allocation4 + $0x68] sm:$0xff]
    %v1087 = vld [vmem:[#allocation4 + $0x70] sm:$0xff]
    %v1088 = vld [vmem:[#allocation4 + $0x78] sm:$0xff]
    %v1089 = vld [vmem:[#allocation4 + $0x80] sm:$0xff]
    %v1090 = vld [vmem:[#allocation4 + $0x88] sm:$0xff]
    %v1091 = vld [vmem:[#allocation4 + $0x90] sm:$0xff]
    %v1092 = vld [vmem:[#allocation4 + $0x98] sm:$0xff]
    %v1093 = vld [vmem:[#allocation4 + $0xa0] sm:$0xff]
    %v1094 = vld [vmem:[#allocation4 + $0xa8] sm:$0xff]
    %v1095 = vld [vmem:[#allocation4 + $0xb0] sm:$0xff]
    %v1096 = vld [vmem:[#allocation4 + $0xb8] sm:$0xff]
    %v1097 = vld [vmem:[#allocation4 + $0xc0] sm:$0xff]
    %v1098 = vld [vmem:[#allocation4 + $0xc8] sm:$0xff]
    %v1099 = vld [vmem:[#allocation4 + $0xd0] sm:$0xff]
    %v1100 = vld [vmem:[#allocation4 + $0xd8] sm:$0xff]
    %v1101 = vld [vmem:[#allocation4 + $0xe0] sm:$0xff]
    %v1102 = vld [vmem:[#allocation4 + $0xe8] sm:$0xff]
    %v1103 = vld [vmem:[#allocation4 + $0xf0] sm:$0xff]
    %v1104 = vld [vmem:[#allocation4 + $0xf8] sm:$0xff]
    %v1137 = vunpack.c.l.b16 %v1073
    %v1138 = vunpack.c.h.b16 %v1073
    %v1139 = vunpack.c.l.b16 %v1074
    %v1140 = vunpack.c.h.b16 %v1074
    %v1141 = vunpack.c.l.b16 %v1075
    %v1142 = vunpack.c.h.b16 %v1075
    %v1143 = vunpack.c.l.b16 %v1076
    %v1144 = vunpack.c.h.b16 %v1076
    %v1145 = vunpack.c.l.b16 %v1077
    %v1146 = vunpack.c.h.b16 %v1077
    %v1147 = vunpack.c.l.b16 %v1078
    %v1148 = vunpack.c.h.b16 %v1078
    %v1149 = vunpack.c.l.b16 %v1079
    %v1150 = vunpack.c.h.b16 %v1079
    %v1151 = vunpack.c.l.b16 %v1080
    %v1152 = vunpack.c.h.b16 %v1080
    %v1153 = vunpack.c.l.b16 %v1081
    %v1154 = vunpack.c.h.b16 %v1081
    %v1155 = vunpack.c.l.b16 %v1082
    %v1156 = vunpack.c.h.b16 %v1082
    %v1157 = vunpack.c.l.b16 %v1083
    %v1158 = vunpack.c.h.b16 %v1083
    %v1159 = vunpack.c.l.b16 %v1084
    %v1160 = vunpack.c.h.b16 %v1084
    %v1161 = vunpack.c.l.b16 %v1085
    %v1162 = vunpack.c.h.b16 %v1085
    %v1163 = vunpack.c.l.b16 %v1086
    %v1164 = vunpack.c.h.b16 %v1086
    %v1165 = vunpack.c.l.b16 %v1087
    %v1166 = vunpack.c.h.b16 %v1087
    %v1167 = vunpack.c.l.b16 %v1088
    %v1168 = vunpack.c.h.b16 %v1088
    %v1169 = vunpack.c.l.b16 %v1089
    %v1170 = vunpack.c.h.b16 %v1089
    %v1171 = vunpack.c.l.b16 %v1090
    %v1172 = vunpack.c.h.b16 %v1090
    %v1173 = vunpack.c.l.b16 %v1091
    %v1174 = vunpack.c.h.b16 %v1091
    %v1175 = vunpack.c.l.b16 %v1092
    %v1176 = vunpack.c.h.b16 %v1092
    %v1177 = vunpack.c.l.b16 %v1093
    %v1178 = vunpack.c.h.b16 %v1093
    %v1179 = vunpack.c.l.b16 %v1094
    %v1180 = vunpack.c.h.b16 %v1094
    %v1181 = vunpack.c.l.b16 %v1095
    %v1182 = vunpack.c.h.b16 %v1095
    %v1183 = vunpack.c.l.b16 %v1096
    %v1184 = vunpack.c.h.b16 %v1096
    %v1185 = vunpack.c.l.b16 %v1097
    %v1186 = vunpack.c.h.b16 %v1097
    %v1187 = vunpack.c.l.b16 %v1098
    %v1188 = vunpack.c.h.b16 %v1098
    %v1189 = vunpack.c.l.b16 %v1099
    %v1190 = vunpack.c.h.b16 %v1099
    %v1191 = vunpack.c.l.b16 %v1100
    %v1192 = vunpack.c.h.b16 %v1100
    %v1193 = vunpack.c.l.b16 %v1101
    %v1194 = vunpack.c.h.b16 %v1101
    %v1195 = vunpack.c.l.b16 %v1102
    %v1196 = vunpack.c.h.b16 %v1102
    %v1197 = vunpack.c.l.b16 %v1103
    %v1198 = vunpack.c.h.b16 %v1103
    %v1199 = vunpack.c.l.b16 %v1104
    %v1200 = vunpack.c.h.b16 %v1104
    %v1201 = vpack.c.b16 %v1141, %v1137
    %v1202 = vpack.c.b16 %v1142, %v1138
    %v1203 = vpack.c.b16 %v1143, %v1139
    %v1204 = vpack.c.b16 %v1144, %v1140
    %v1205 = vpack.c.b16 %v1149, %v1145
    %v1206 = vpack.c.b16 %v1150, %v1146
    %v1207 = vpack.c.b16 %v1151, %v1147
    %v1208 = vpack.c.b16 %v1152, %v1148
    %v1209 = vpack.c.b16 %v1157, %v1153
    %v1210 = vpack.c.b16 %v1158, %v1154
    %v1211 = vpack.c.b16 %v1159, %v1155
    %v1212 = vpack.c.b16 %v1160, %v1156
    %v1213 = vpack.c.b16 %v1165, %v1161
    %v1214 = vpack.c.b16 %v1166, %v1162
    %v1215 = vpack.c.b16 %v1167, %v1163
    %v1216 = vpack.c.b16 %v1168, %v1164
    %v1217 = vpack.c.b16 %v1173, %v1169
    %v1218 = vpack.c.b16 %v1174, %v1170
    %v1219 = vpack.c.b16 %v1175, %v1171
    %v1220 = vpack.c.b16 %v1176, %v1172
    %v1221 = vpack.c.b16 %v1181, %v1177
    %v1222 = vpack.c.b16 %v1182, %v1178
    %v1223 = vpack.c.b16 %v1183, %v1179
    %v1224 = vpack.c.b16 %v1184, %v1180
    %v1225 = vpack.c.b16 %v1189, %v1185
    %v1226 = vpack.c.b16 %v1190, %v1186
    %v1227 = vpack.c.b16 %v1191, %v1187
    %v1228 = vpack.c.b16 %v1192, %v1188
    %v1229 = vpack.c.b16 %v1197, %v1193
    %v1230 = vpack.c.b16 %v1198, %v1194
    %v1231 = vpack.c.b16 %v1199, %v1195
    %v1232 = vpack.c.b16 %v1200, %v1196
    %1265 = vmatprep.subr.bf16.mxu0 %v1230
    %1266 = vmatpush1.bf16.msra.mxu0 %v1229
    %1267 = vmatprep.subr.bf16.mxu0 %v1226
    %1268 = vmatpush1.bf16.msra.mxu0 %v1225
    %1269 = vmatprep.subr.bf16.mxu0 %v1222
    %1270 = vmatpush1.bf16.msra.mxu0 %v1221
    %1271 = vmatprep.subr.bf16.mxu0 %v1218
    %1272 = vmatpush1.bf16.msra.mxu0 %v1217
    %1273 = vmatprep.subr.bf16.mxu0 %v1214
    %1274 = vmatpush1.bf16.msra.mxu0 %v1213
    %1275 = vmatprep.subr.bf16.mxu0 %v1210
    %1276 = vmatpush1.bf16.msra.mxu0 %v1209
    %1277 = vmatprep.subr.bf16.mxu0 %v1206
    %1278 = vmatpush1.bf16.msra.mxu0 %v1205
    %1279 = vmatprep.subr.bf16.mxu0 %v1202
    %1280 = vmatpush1.bf16.msra.mxu0 %v1201
    %1281 = vmatprep.subr.bf16.mxu0 0
    %1282 = vmatpush2.bf16.msra.mxu0 0
    %1283 = vmatprep.subr.bf16.mxu0 0
    %1284 = vmatpush2.bf16.msra.mxu0 0
    %1285 = vmatprep.subr.bf16.mxu0 0
    %1286 = vmatpush2.bf16.msra.mxu0 0
    %1287 = vmatprep.subr.bf16.mxu0 0
    %1288 = vmatpush2.bf16.msra.mxu0 0
    %1289 = vmatprep.subr.bf16.mxu0 0
    %1290 = vmatpush2.bf16.msra.mxu0 0
    %1291 = vmatprep.subr.bf16.mxu0 0
    %1292 = vmatpush2.bf16.msra.mxu0 0
    %1293 = vmatprep.subr.bf16.mxu0 0
    %1294 = vmatpush2.bf16.msra.mxu0 0
    %1295 = vmatprep.subr.bf16.mxu0 0
    %1296 = vmatpush2.bf16.msra.mxu0 0
    %1297 = vmatprep.mubr.bf16.mxu0 0
    %1298 = vmatmul.mubr.bf16.gmra.mxu0 %v1072
    %v1299 = vpop.f32.mrf.mxu0
    %v1300 = vadd.f32 0.0, %v1299
    %v1301 = vpop.f32.mrf.mxu0
    %v1302 = vadd.f32 0.0, %v1301
    %v1303 = vpop.f32.mrf.mxu0
    %v1304 = vpop.f32.mrf.mxu0
    %1305 = vdwg.mxu0
    %1306 = vmatprep.subr.bf16.mxu0 %v1232
    %1307 = vmatpush1.bf16.msra.mxu0 %v1231
    %1308 = vmatprep.subr.bf16.mxu0 %v1228
    %1309 = vmatpush1.bf16.msra.mxu0 %v1227
    %1310 = vmatprep.subr.bf16.mxu0 %v1224
    %1311 = vmatpush1.bf16.msra.mxu0 %v1223
    %1312 = vmatprep.subr.bf16.mxu0 %v1220
    %1313 = vmatpush1.bf16.msra.mxu0 %v1219
    %1314 = vmatprep.subr.bf16.mxu0 %v1216
    %1315 = vmatpush1.bf16.msra.mxu0 %v1215
    %1316 = vmatprep.subr.bf16.mxu0 %v1212
    %1317 = vmatpush1.bf16.msra.mxu0 %v1211
    %1318 = vmatprep.subr.bf16.mxu0 %v1208
    %1319 = vmatpush1.bf16.msra.mxu0 %v1207
    %1320 = vmatprep.subr.bf16.mxu0 %v1204
    %1321 = vmatpush1.bf16.msra.mxu0 %v1203
    %1322 = vmatprep.subr.bf16.mxu0 0
    %1323 = vmatpush2.bf16.msra.mxu0 0
    %1324 = vmatprep.subr.bf16.mxu0 0
    %1325 = vmatpush2.bf16.msra.mxu0 0
    %1326 = vmatprep.subr.bf16.mxu0 0
    %1327 = vmatpush2.bf16.msra.mxu0 0
    %1328 = vmatprep.subr.bf16.mxu0 0
    %1329 = vmatpush2.bf16.msra.mxu0 0
    %1330 = vmatprep.subr.bf16.mxu0 0
    %1331 = vmatpush2.bf16.msra.mxu0 0
    %1332 = vmatprep.subr.bf16.mxu0 0
    %1333 = vmatpush2.bf16.msra.mxu0 0
    %1334 = vmatprep.subr.bf16.mxu0 0
    %1335 = vmatpush2.bf16.msra.mxu0 0
    %1336 = vmatprep.subr.bf16.mxu0 0
    %1337 = vmatpush2.bf16.msra.mxu0 0
    %1338 = vmatprep.mubr.bf16.mxu0 0
    %1339 = vmatmul.mubr.bf16.gmra.mxu0 %v1072
    %v1340 = vpop.f32.mrf.mxu0
    %v1341 = vadd.f32 0.0, %v1340
    %v1342 = vpop.f32.mrf.mxu0
    %v1343 = vadd.f32 0.0, %v1342
    %v1344 = vpop.f32.mrf.mxu0
    %v1345 = vpop.f32.mrf.mxu0
    %1346 = vdwg.mxu0
    %v1379 = vunpack.c.l.b16 %v1040
    %v1380 = vunpack.c.h.b16 %v1040
    %v1381 = vunpack.c.l.b16 %v1041
    %v1382 = vunpack.c.h.b16 %v1041
    %v1383 = vunpack.c.l.b16 %v1042
    %v1384 = vunpack.c.h.b16 %v1042
    %v1385 = vunpack.c.l.b16 %v1043
    %v1386 = vunpack.c.h.b16 %v1043
    %v1387 = vunpack.c.l.b16 %v1044
    %v1388 = vunpack.c.h.b16 %v1044
    %v1389 = vunpack.c.l.b16 %v1045
    %v1390 = vunpack.c.h.b16 %v1045
    %v1391 = vunpack.c.l.b16 %v1046
    %v1392 = vunpack.c.h.b16 %v1046
    %v1393 = vunpack.c.l.b16 %v1047
    %v1394 = vunpack.c.h.b16 %v1047
    %v1395 = vunpack.c.l.b16 %v1048
    %v1396 = vunpack.c.h.b16 %v1048
    %v1397 = vunpack.c.l.b16 %v1049
    %v1398 = vunpack.c.h.b16 %v1049
    %v1399 = vunpack.c.l.b16 %v1050
    %v1400 = vunpack.c.h.b16 %v1050
    %v1401 = vunpack.c.l.b16 %v1051
    %v1402 = vunpack.c.h.b16 %v1051
    %v1403 = vunpack.c.l.b16 %v1052
    %v1404 = vunpack.c.h.b16 %v1052
    %v1405 = vunpack.c.l.b16 %v1053
    %v1406 = vunpack.c.h.b16 %v1053
    %v1407 = vunpack.c.l.b16 %v1054
    %v1408 = vunpack.c.h.b16 %v1054
    %v1409 = vunpack.c.l.b16 %v1055
    %v1410 = vunpack.c.h.b16 %v1055
    %v1411 = vunpack.c.l.b16 %v1056
    %v1412 = vunpack.c.h.b16 %v1056
    %v1413 = vunpack.c.l.b16 %v1057
    %v1414 = vunpack.c.h.b16 %v1057
    %v1415 = vunpack.c.l.b16 %v1058
    %v1416 = vunpack.c.h.b16 %v1058
    %v1417 = vunpack.c.l.b16 %v1059
    %v1418 = vunpack.c.h.b16 %v1059
    %v1419 = vunpack.c.l.b16 %v1060
    %v1420 = vunpack.c.h.b16 %v1060
    %v1421 = vunpack.c.l.b16 %v1061
    %v1422 = vunpack.c.h.b16 %v1061
    %v1423 = vunpack.c.l.b16 %v1062
    %v1424 = vunpack.c.h.b16 %v1062
    %v1425 = vunpack.c.l.b16 %v1063
    %v1426 = vunpack.c.h.b16 %v1063
    %v1427 = vunpack.c.l.b16 %v1064
    %v1428 = vunpack.c.h.b16 %v1064
    %v1429 = vunpack.c.l.b16 %v1065
    %v1430 = vunpack.c.h.b16 %v1065
    %v1431 = vunpack.c.l.b16 %v1066
    %v1432 = vunpack.c.h.b16 %v1066
    %v1433 = vunpack.c.l.b16 %v1067
    %v1434 = vunpack.c.h.b16 %v1067
    %v1435 = vunpack.c.l.b16 %v1068
    %v1436 = vunpack.c.h.b16 %v1068
    %v1437 = vunpack.c.l.b16 %v1069
    %v1438 = vunpack.c.h.b16 %v1069
    %v1439 = vunpack.c.l.b16 %v1070
    %v1440 = vunpack.c.h.b16 %v1070
    %v1441 = vunpack.c.l.b16 %v1071
    %v1442 = vunpack.c.h.b16 %v1071
    %v1443 = vpack.c.b16 %v1383, %v1379
    %v1444 = vpack.c.b16 %v1384, %v1380
    %v1445 = vpack.c.b16 %v1385, %v1381
    %v1446 = vpack.c.b16 %v1386, %v1382
    %v1447 = vpack.c.b16 %v1391, %v1387
    %v1448 = vpack.c.b16 %v1392, %v1388
    %v1449 = vpack.c.b16 %v1393, %v1389
    %v1450 = vpack.c.b16 %v1394, %v1390
    %v1451 = vpack.c.b16 %v1399, %v1395
    %v1452 = vpack.c.b16 %v1400, %v1396
    %v1453 = vpack.c.b16 %v1401, %v1397
    %v1454 = vpack.c.b16 %v1402, %v1398
    %v1455 = vpack.c.b16 %v1407, %v1403
    %v1456 = vpack.c.b16 %v1408, %v1404
    %v1457 = vpack.c.b16 %v1409, %v1405
    %v1458 = vpack.c.b16 %v1410, %v1406
    %v1459 = vpack.c.b16 %v1415, %v1411
    %v1460 = vpack.c.b16 %v1416, %v1412
    %v1461 = vpack.c.b16 %v1417, %v1413
    %v1462 = vpack.c.b16 %v1418, %v1414
    %v1463 = vpack.c.b16 %v1423, %v1419
    %v1464 = vpack.c.b16 %v1424, %v1420
    %v1465 = vpack.c.b16 %v1425, %v1421
    %v1466 = vpack.c.b16 %v1426, %v1422
    %v1467 = vpack.c.b16 %v1431, %v1427
    %v1468 = vpack.c.b16 %v1432, %v1428
    %v1469 = vpack.c.b16 %v1433, %v1429
    %v1470 = vpack.c.b16 %v1434, %v1430
    %v1471 = vpack.c.b16 %v1439, %v1435
    %v1472 = vpack.c.b16 %v1440, %v1436
    %v1473 = vpack.c.b16 %v1441, %v1437
    %v1474 = vpack.c.b16 %v1442, %v1438
    %1507 = vmatprep.subr.bf16.mxu0 %v1472
    %1508 = vmatpush1.bf16.msra.mxu0 %v1471
    %1509 = vmatprep.subr.bf16.mxu0 %v1468
    %1510 = vmatpush1.bf16.msra.mxu0 %v1467
    %1511 = vmatprep.subr.bf16.mxu0 %v1464
    %1512 = vmatpush1.bf16.msra.mxu0 %v1463
    %1513 = vmatprep.subr.bf16.mxu0 %v1460
    %1514 = vmatpush1.bf16.msra.mxu0 %v1459
    %1515 = vmatprep.subr.bf16.mxu0 %v1456
    %1516 = vmatpush1.bf16.msra.mxu0 %v1455
    %1517 = vmatprep.subr.bf16.mxu0 %v1452
    %1518 = vmatpush1.bf16.msra.mxu0 %v1451
    %1519 = vmatprep.subr.bf16.mxu0 %v1448
    %1520 = vmatpush1.bf16.msra.mxu0 %v1447
    %1521 = vmatprep.subr.bf16.mxu0 %v1444
    %1522 = vmatpush1.bf16.msra.mxu0 %v1443
    %1523 = vmatprep.subr.bf16.mxu0 0
    %1524 = vmatpush2.bf16.msra.mxu0 0
    %1525 = vmatprep.subr.bf16.mxu0 0
    %1526 = vmatpush2.bf16.msra.mxu0 0
    %1527 = vmatprep.subr.bf16.mxu0 0
    %1528 = vmatpush2.bf16.msra.mxu0 0
    %1529 = vmatprep.subr.bf16.mxu0 0
    %1530 = vmatpush2.bf16.msra.mxu0 0
    %1531 = vmatprep.subr.bf16.mxu0 0
    %1532 = vmatpush2.bf16.msra.mxu0 0
    %1533 = vmatprep.subr.bf16.mxu0 0
    %1534 = vmatpush2.bf16.msra.mxu0 0
    %1535 = vmatprep.subr.bf16.mxu0 0
    %1536 = vmatpush2.bf16.msra.mxu0 0
    %1537 = vmatprep.subr.bf16.mxu0 0
    %1538 = vmatpush2.bf16.msra.mxu0 0
    %1539 = vmatprep.mubr.bf16.mxu0 0
    %1540 = vmatmul.mubr.bf16.gmra.mxu0 %v1039
    %v1541 = vpop.f32.mrf.mxu0
    %v1542 = vadd.f32 %v1300, %v1541
    %v1543 = vpop.f32.mrf.mxu0
    %v1544 = vadd.f32 %v1302, %v1543
    %v1545 = vpop.f32.mrf.mxu0
    %v1546 = vpop.f32.mrf.mxu0
    %1547 = vdwg.mxu0
    %1548 = vmatprep.subr.bf16.mxu0 %v1474
    %1549 = vmatpush1.bf16.msra.mxu0 %v1473
    %1550 = vmatprep.subr.bf16.mxu0 %v1470
    %1551 = vmatpush1.bf16.msra.mxu0 %v1469
    %1552 = vmatprep.subr.bf16.mxu0 %v1466
    %1553 = vmatpush1.bf16.msra.mxu0 %v1465
    %1554 = vmatprep.subr.bf16.mxu0 %v1462
    %1555 = vmatpush1.bf16.msra.mxu0 %v1461
    %1556 = vmatprep.subr.bf16.mxu0 %v1458
    %1557 = vmatpush1.bf16.msra.mxu0 %v1457
    %1558 = vmatprep.subr.bf16.mxu0 %v1454
    %1559 = vmatpush1.bf16.msra.mxu0 %v1453
    %1560 = vmatprep.subr.bf16.mxu0 %v1450
    %1561 = vmatpush1.bf16.msra.mxu0 %v1449
    %1562 = vmatprep.subr.bf16.mxu0 %v1446
    %1563 = vmatpush1.bf16.msra.mxu0 %v1445
    %1564 = vmatprep.subr.bf16.mxu0 0
    %1565 = vmatpush2.bf16.msra.mxu0 0
    %1566 = vmatprep.subr.bf16.mxu0 0
    %1567 = vmatpush2.bf16.msra.mxu0 0
    %1568 = vmatprep.subr.bf16.mxu0 0
    %1569 = vmatpush2.bf16.msra.mxu0 0
    %1570 = vmatprep.subr.bf16.mxu0 0
    %1571 = vmatpush2.bf16.msra.mxu0 0
    %1572 = vmatprep.subr.bf16.mxu0 0
    %1573 = vmatpush2.bf16.msra.mxu0 0
    %1574 = vmatprep.subr.bf16.mxu0 0
    %1575 = vmatpush2.bf16.msra.mxu0 0
    %1576 = vmatprep.subr.bf16.mxu0 0
    %1577 = vmatpush2.bf16.msra.mxu0 0
    %1578 = vmatprep.subr.bf16.mxu0 0
    %1579 = vmatpush2.bf16.msra.mxu0 0
    %1580 = vmatprep.mubr.bf16.mxu0 0
    %1581 = vmatmul.mubr.bf16.gmra.mxu0 %v1039
    %v1582 = vpop.f32.mrf.mxu0
    %v1583 = vadd.f32 %v1341, %v1582
    %v1584 = vpop.f32.mrf.mxu0
    %v1585 = vadd.f32 %v1343, %v1584
    %v1586 = vpop.f32.mrf.mxu0
    %v1587 = vpop.f32.mrf.mxu0
    %1588 = vdwg.mxu0
    %s1589 = scalar_lea.vmem %s7, 1
    %v1590 = vld [vmem:[%s1589] ss:$2 sm:$0xf]
    %v1592 = vlaneseq
    %v1593 = vshrl.u32 %v1592, 7
    %v1594 = vsub.s32 0, %v1593
    %v1595 = vrot.slane %v1590, %v1594
    %v1596 = vlaneseq
    %v1597 = vshrl.u32 %v1596, 7
    %v1598 = vsub.s32 1, %v1597
    %v1599 = vrot.slane %v1590, %v1598
    %v1600 = vlaneseq
    %v1601 = vshrl.u32 %v1600, 7
    %v1602 = vsub.s32 2, %v1601
    %v1603 = vrot.slane %v1590, %v1602
    %v1604 = vlaneseq
    %v1605 = vshrl.u32 %v1604, 7
    %v1606 = vsub.s32 3, %v1605
    %v1607 = vrot.slane %v1590, %v1606
    %v1612 = vadd.f32 %v1542, %v1595
    %v1613 = vadd.f32 %v1544, %v1599
    %v1614 = vadd.f32 %v1583, %v1603
    %v1615 = vadd.f32 %v1585, %v1607
    %v1616 = vmax.f32 %v1612, 0.0
    %v1617 = vmax.f32 %v1613, 0.0
    %v1618 = vmax.f32 %v1614, 0.0
    %v1619 = vmax.f32 %v1615, 0.0
    %v1621 = vrot.slane %v1617, 6
    %v1624 = vrot.slane %v1618, 4
    %v1627 = vrot.slane %v1619, 2
    %vm1629 = vcmask 1041408
    %v1630 = vsel %vm1629, %v1616, %v1621
    %vm1631 = vcmask 1043456
    %v1632 = vsel %vm1631, %v1630, %v1624
    %vm1633 = vcmask 1045504
    %v1634 = vsel %vm1633, %v1632, %v1627
    %v1635 = vpack.c.bf16 %v1634, %v1634
    %v1636 = vld [vmem:[#allocation6] sm:$0xff]
    %v1637 = vld [vmem:[#allocation6 + $0x8] sm:$0xff]
    %v1638 = vld [vmem:[#allocation6 + $0x10] sm:$0xff]
    %v1639 = vld [vmem:[#allocation6 + $0x18] sm:$0xff]
    %v1640 = vld [vmem:[#allocation6 + $0x20] sm:$0xff]
    %v1641 = vld [vmem:[#allocation6 + $0x28] sm:$0xff]
    %v1642 = vld [vmem:[#allocation6 + $0x30] sm:$0xff]
    %v1643 = vld [vmem:[#allocation6 + $0x38] sm:$0xff]
    %v1644 = vld [vmem:[#allocation6 + $0x40] sm:$0xff]
    %v1645 = vld [vmem:[#allocation6 + $0x48] sm:$0xff]
    %v1646 = vld [vmem:[#allocation6 + $0x50] sm:$0xff]
    %v1647 = vld [vmem:[#allocation6 + $0x58] sm:$0xff]
    %v1648 = vld [vmem:[#allocation6 + $0x60] sm:$0xff]
    %v1649 = vld [vmem:[#allocation6 + $0x68] sm:$0xff]
    %v1650 = vld [vmem:[#allocation6 + $0x70] sm:$0xff]
    %v1651 = vld [vmem:[#allocation6 + $0x78] sm:$0xff]
    %v1668 = vunpack.c.l.b16 %v1636
    %v1669 = vunpack.c.h.b16 %v1636
    %v1670 = vunpack.c.l.b16 %v1637
    %v1671 = vunpack.c.h.b16 %v1637
    %v1672 = vunpack.c.l.b16 %v1638
    %v1673 = vunpack.c.h.b16 %v1638
    %v1674 = vunpack.c.l.b16 %v1639
    %v1675 = vunpack.c.h.b16 %v1639
    %v1676 = vunpack.c.l.b16 %v1640
    %v1677 = vunpack.c.h.b16 %v1640
    %v1678 = vunpack.c.l.b16 %v1641
    %v1679 = vunpack.c.h.b16 %v1641
    %v1680 = vunpack.c.l.b16 %v1642
    %v1681 = vunpack.c.h.b16 %v1642
    %v1682 = vunpack.c.l.b16 %v1643
    %v1683 = vunpack.c.h.b16 %v1643
    %v1684 = vunpack.c.l.b16 %v1644
    %v1685 = vunpack.c.h.b16 %v1644
    %v1686 = vunpack.c.l.b16 %v1645
    %v1687 = vunpack.c.h.b16 %v1645
    %v1688 = vunpack.c.l.b16 %v1646
    %v1689 = vunpack.c.h.b16 %v1646
    %v1690 = vunpack.c.l.b16 %v1647
    %v1691 = vunpack.c.h.b16 %v1647
    %v1692 = vunpack.c.l.b16 %v1648
    %v1693 = vunpack.c.h.b16 %v1648
    %v1694 = vunpack.c.l.b16 %v1649
    %v1695 = vunpack.c.h.b16 %v1649
    %v1696 = vunpack.c.l.b16 %v1650
    %v1697 = vunpack.c.h.b16 %v1650
    %v1698 = vunpack.c.l.b16 %v1651
    %v1699 = vunpack.c.h.b16 %v1651
    %v1700 = vpack.c.b16 %v1670, %v1668
    %v1701 = vpack.c.b16 %v1671, %v1669
    %v1702 = vpack.c.b16 %v1674, %v1672
    %v1703 = vpack.c.b16 %v1675, %v1673
    %v1704 = vpack.c.b16 %v1678, %v1676
    %v1705 = vpack.c.b16 %v1679, %v1677
    %v1706 = vpack.c.b16 %v1682, %v1680
    %v1707 = vpack.c.b16 %v1683, %v1681
    %v1708 = vpack.c.b16 %v1686, %v1684
    %v1709 = vpack.c.b16 %v1687, %v1685
    %v1710 = vpack.c.b16 %v1690, %v1688
    %v1711 = vpack.c.b16 %v1691, %v1689
    %v1712 = vpack.c.b16 %v1694, %v1692
    %v1713 = vpack.c.b16 %v1695, %v1693
    %v1714 = vpack.c.b16 %v1698, %v1696
    %v1715 = vpack.c.b16 %v1699, %v1697
    %1732 = vmatprep.subr.bf16.mxu0 %v1715
    %1733 = vmatpush1.bf16.msra.mxu0 %v1714
    %1734 = vmatprep.subr.bf16.mxu0 %v1713
    %1735 = vmatpush1.bf16.msra.mxu0 %v1712
    %1736 = vmatprep.subr.bf16.mxu0 %v1711
    %1737 = vmatpush1.bf16.msra.mxu0 %v1710
    %1738 = vmatprep.subr.bf16.mxu0 %v1709
    %1739 = vmatpush1.bf16.msra.mxu0 %v1708
    %1740 = vmatprep.subr.bf16.mxu0 %v1707
    %1741 = vmatpush1.bf16.msra.mxu0 %v1706
    %1742 = vmatprep.subr.bf16.mxu0 %v1705
    %1743 = vmatpush1.bf16.msra.mxu0 %v1704
    %1744 = vmatprep.subr.bf16.mxu0 %v1703
    %1745 = vmatpush1.bf16.msra.mxu0 %v1702
    %1746 = vmatprep.subr.bf16.mxu0 %v1701
    %1747 = vmatpush1.bf16.msra.mxu0 %v1700
    %1748 = vmatprep.subr.bf16.mxu0 0
    %1749 = vmatpush2.bf16.msra.mxu0 0
    %1750 = vmatprep.subr.bf16.mxu0 0
    %1751 = vmatpush2.bf16.msra.mxu0 0
    %1752 = vmatprep.subr.bf16.mxu0 0
    %1753 = vmatpush2.bf16.msra.mxu0 0
    %1754 = vmatprep.subr.bf16.mxu0 0
    %1755 = vmatpush2.bf16.msra.mxu0 0
    %1756 = vmatprep.subr.bf16.mxu0 0
    %1757 = vmatpush2.bf16.msra.mxu0 0
    %1758 = vmatprep.subr.bf16.mxu0 0
    %1759 = vmatpush2.bf16.msra.mxu0 0
    %1760 = vmatprep.subr.bf16.mxu0 0
    %1761 = vmatpush2.bf16.msra.mxu0 0
    %1762 = vmatprep.subr.bf16.mxu0 0
    %1763 = vmatpush2.bf16.msra.mxu0 0
    %1764 = vmatprep.mubr.bf16.mxu0 0
    %1765 = vmatmul.mubr.bf16.gmra.mxu0 %v1635
    %v1766 = vpop.f32.mrf.mxu0
    %v1767 = vadd.f32 0.0, %v1766
    %v1768 = vpop.f32.mrf.mxu0
    %v1769 = vadd.f32 0.0, %v1768
    %v1770 = vpop.f32.mrf.mxu0
    %v1771 = vpop.f32.mrf.mxu0
    %1772 = vdwg.mxu0
    %v1773 = vsub.f32 %v71, %v1767
    %v1774 = vsub.f32 %v72, %v1769
    %v1775 = vmul.f32 %v1773, %v1773
    %v1776 = vmul.f32 %v1774, %v1774
    %v1777 = vpack.c.bf16 %v1775, %v1775
    %v1778 = vpack.c.bf16 %v1776, %v1776
    %1779 = vmatprep.subr.bf16.mxu0 %v218
    %1780 = vmatpush1.bf16.msra.mxu0 %v217
    %1781 = vmatprep.subr.bf16.mxu0 %v216
    %1782 = vmatpush1.bf16.msra.mxu0 %v215
    %1783 = vmatprep.subr.bf16.mxu0 %v214
    %1784 = vmatpush1.bf16.msra.mxu0 %v213
    %1785 = vmatprep.subr.bf16.mxu0 %v212
    %1786 = vmatpush1.bf16.msra.mxu0 %v211
    %1787 = vmatprep.subr.bf16.mxu0 %v210
    %1788 = vmatpush1.bf16.msra.mxu0 %v209
    %1789 = vmatprep.subr.bf16.mxu0 %v208
    %1790 = vmatpush1.bf16.msra.mxu0 %v207
    %1791 = vmatprep.subr.bf16.mxu0 %v206
    %1792 = vmatpush1.bf16.msra.mxu0 %v205
    %1793 = vmatprep.subr.bf16.mxu0 %v204
    %1794 = vmatpush1.bf16.msra.mxu0 %v203
    %1795 = vmatprep.subr.bf16.mxu0 %v234
    %1796 = vmatpush2.bf16.msra.mxu0 %v233
    %1797 = vmatprep.subr.bf16.mxu0 %v232
    %1798 = vmatpush2.bf16.msra.mxu0 %v231
    %1799 = vmatprep.subr.bf16.mxu0 %v230
    %1800 = vmatpush2.bf16.msra.mxu0 %v229
    %1801 = vmatprep.subr.bf16.mxu0 %v228
    %1802 = vmatpush2.bf16.msra.mxu0 %v227
    %1803 = vmatprep.subr.bf16.mxu0 %v226
    %1804 = vmatpush2.bf16.msra.mxu0 %v225
    %1805 = vmatprep.subr.bf16.mxu0 %v224
    %1806 = vmatpush2.bf16.msra.mxu0 %v223
    %1807 = vmatprep.subr.bf16.mxu0 %v222
    %1808 = vmatpush2.bf16.msra.mxu0 %v221
    %1809 = vmatprep.subr.bf16.mxu0 %v220
    %1810 = vmatpush2.bf16.msra.mxu0 %v219
    %1811 = vmatprep.mubr.bf16.mxu0 %v1778
    %1812 = vmatmul.mubr.bf16.gmra.mxu0 %v1777
    %v1813 = vpop.f32.mrf.mxu0
    %v1814 = vadd.f32 0.0, %v1813
    %v1815 = vpop.f32.mrf.mxu0
    %v1816 = vadd.f32 0.0, %v1815
    %v1817 = vpop.f32.mrf.mxu0
    %v1818 = vpop.f32.mrf.mxu0
    %1819 = vdwg.mxu0
    %v1820 = vmul.f32 %v1814, 1.2473733
    %v1821 = vmul.f32 %v1816, 1.2473733
    %v1822 = vmul.f32 %v1814, 0.2829539
    %v1823 = vmul.f32 %v1816, 0.2829539
    %v1826 = vrot.slane %v1822, 2
    %v1827 = vrot.slane %v1823, 2
    %v1830 = vadd.f32 %v1820, %v1826
    %v1831 = vadd.f32 %v1821, %v1827
    %v1832 = vmul.f32 %v1814, 0.6920723
    %v1833 = vmul.f32 %v1816, 0.6920723
    %v1836 = vrot.slane %v1832, 4
    %v1837 = vrot.slane %v1833, 4
    %v1840 = vadd.f32 %v1830, %v1836
    %v1841 = vadd.f32 %v1831, %v1837
    %v1842 = vmul.f32 %v1814, 1.5845507
    %v1843 = vmul.f32 %v1816, 1.5845507
    %v1846 = vrot.slane %v1842, 6
    %v1847 = vrot.slane %v1843, 6
    %v1850 = vadd.f32 %v1840, %v1846
    %v1851 = vadd.f32 %v1841, %v1847
    %v1852 = vadd.f32 %v1850, 0.1
    %v1853 = vadd.f32 %v1851, 0.1
    %v1854 = vmax.f32 %v1852, 0.0
    %v1855 = vmax.f32 %v1853, 0.0
    %v1856 = vmul.f32 %v1814, 1.320563
    %v1857 = vmul.f32 %v1816, 1.320563
    %v1858 = vmul.f32 %v1814, -0.6910398
    %v1859 = vmul.f32 %v1816, -0.6910398
    %v1862 = vrot.slane %v1858, 2
    %v1863 = vrot.slane %v1859, 2
    %v1866 = vadd.f32 %v1856, %v1862
    %v1867 = vadd.f32 %v1857, %v1863
    %v1868 = vmul.f32 %v1814, 0.67181396
    %v1869 = vmul.f32 %v1816, 0.67181396
    %v1872 = vrot.slane %v1868, 4
    %v1873 = vrot.slane %v1869, 4
    %v1876 = vadd.f32 %v1866, %v1872
    %v1877 = vadd.f32 %v1867, %v1873
    %v1878 = vmul.f32 %v1814, -0.107025705
    %v1879 = vmul.f32 %v1816, -0.107025705
    %v1882 = vrot.slane %v1878, 6
    %v1883 = vrot.slane %v1879, 6
    %v1886 = vadd.f32 %v1876, %v1882
    %v1887 = vadd.f32 %v1877, %v1883
    %v1888 = vadd.f32 %v1886, 0.1
    %v1889 = vadd.f32 %v1887, 0.1
    %v1890 = vmax.f32 %v1888, 0.0
    %v1891 = vmax.f32 %v1889, 0.0
    %v1892 = vpack.c.bf16 %v1854, %v1854
    %v1893 = vpack.c.bf16 %v1855, %v1855
    %v1894 = vpack.c.bf16 %v1890, %v1890
    %v1895 = vpack.c.bf16 %v1891, %v1891
    %v1897 = vsel %vm636, %v1895, 0
    %1899 = vmatprep.subr.bf16.mxu0 %v593
    %1900 = vmatpush1.bf16.msra.mxu0 %v592
    %1901 = vmatprep.subr.bf16.mxu0 %v589
    %1902 = vmatpush1.bf16.msra.mxu0 %v588
    %1903 = vmatprep.subr.bf16.mxu0 %v585
    %1904 = vmatpush1.bf16.msra.mxu0 %v584
    %1905 = vmatprep.subr.bf16.mxu0 %v581
    %1906 = vmatpush1.bf16.msra.mxu0 %v580
    %1907 = vmatprep.subr.bf16.mxu0 %v577
    %1908 = vmatpush1.bf16.msra.mxu0 %v576
    %1909 = vmatprep.subr.bf16.mxu0 %v573
    %1910 = vmatpush1.bf16.msra.mxu0 %v572
    %1911 = vmatprep.subr.bf16.mxu0 %v569
    %1912 = vmatpush1.bf16.msra.mxu0 %v568
    %1913 = vmatprep.subr.bf16.mxu0 %v565
    %1914 = vmatpush1.bf16.msra.mxu0 %v564
    %1915 = vmatprep.subr.bf16.mxu0 0
    %1916 = vmatpush2.bf16.msra.mxu0 0
    %1917 = vmatprep.subr.bf16.mxu0 0
    %1918 = vmatpush2.bf16.msra.mxu0 0
    %1919 = vmatprep.subr.bf16.mxu0 0
    %1920 = vmatpush2.bf16.msra.mxu0 0
    %1921 = vmatprep.subr.bf16.mxu0 0
    %1922 = vmatpush2.bf16.msra.mxu0 0
    %1923 = vmatprep.subr.bf16.mxu0 0
    %1924 = vmatpush2.bf16.msra.mxu0 0
    %1925 = vmatprep.subr.bf16.mxu0 0
    %1926 = vmatpush2.bf16.msra.mxu0 0
    %1927 = vmatprep.subr.bf16.mxu0 0
    %1928 = vmatpush2.bf16.msra.mxu0 0
    %1929 = vmatprep.subr.bf16.mxu0 %v597
    %1930 = vmatpush2.bf16.msra.mxu0 %v596
    %1931 = vmatprep.mubr.bf16.mxu0 %v1897
    %1932 = vmatmul.mubr.bf16.gmra.mxu0 %v1894
    %v1933 = vpop.f32.mrf.mxu0
    %v1934 = vadd.f32 0.0, %v1933
    %v1935 = vpop.f32.mrf.mxu0
    %v1936 = vadd.f32 0.0, %v1935
    %v1937 = vpop.f32.mrf.mxu0
    %v1938 = vpop.f32.mrf.mxu0
    %1939 = vdwg.mxu0
    %1940 = vmatprep.subr.bf16.mxu0 %v595
    %1941 = vmatpush1.bf16.msra.mxu0 %v594
    %1942 = vmatprep.subr.bf16.mxu0 %v591
    %1943 = vmatpush1.bf16.msra.mxu0 %v590
    %1944 = vmatprep.subr.bf16.mxu0 %v587
    %1945 = vmatpush1.bf16.msra.mxu0 %v586
    %1946 = vmatprep.subr.bf16.mxu0 %v583
    %1947 = vmatpush1.bf16.msra.mxu0 %v582
    %1948 = vmatprep.subr.bf16.mxu0 %v579
    %1949 = vmatpush1.bf16.msra.mxu0 %v578
    %1950 = vmatprep.subr.bf16.mxu0 %v575
    %1951 = vmatpush1.bf16.msra.mxu0 %v574
    %1952 = vmatprep.subr.bf16.mxu0 %v571
    %1953 = vmatpush1.bf16.msra.mxu0 %v570
    %1954 = vmatprep.subr.bf16.mxu0 %v567
    %1955 = vmatpush1.bf16.msra.mxu0 %v566
    %1956 = vmatprep.subr.bf16.mxu0 0
    %1957 = vmatpush2.bf16.msra.mxu0 0
    %1958 = vmatprep.subr.bf16.mxu0 0
    %1959 = vmatpush2.bf16.msra.mxu0 0
    %1960 = vmatprep.subr.bf16.mxu0 0
    %1961 = vmatpush2.bf16.msra.mxu0 0
    %1962 = vmatprep.subr.bf16.mxu0 0
    %1963 = vmatpush2.bf16.msra.mxu0 0
    %1964 = vmatprep.subr.bf16.mxu0 0
    %1965 = vmatpush2.bf16.msra.mxu0 0
    %1966 = vmatprep.subr.bf16.mxu0 0
    %1967 = vmatpush2.bf16.msra.mxu0 0
    %1968 = vmatprep.subr.bf16.mxu0 0
    %1969 = vmatpush2.bf16.msra.mxu0 0
    %1970 = vmatprep.subr.bf16.mxu0 %v599
    %1971 = vmatpush2.bf16.msra.mxu0 %v598
    %1972 = vmatprep.mubr.bf16.mxu0 %v1897
    %1973 = vmatmul.mubr.bf16.gmra.mxu0 %v1894
    %v1974 = vpop.f32.mrf.mxu0
    %v1975 = vadd.f32 0.0, %v1974
    %v1976 = vpop.f32.mrf.mxu0
    %v1977 = vadd.f32 0.0, %v1976
    %v1978 = vpop.f32.mrf.mxu0
    %v1979 = vpop.f32.mrf.mxu0
    %1980 = vdwg.mxu0
    %v1982 = vsel %vm636, %v1893, 0
    %1984 = vmatprep.subr.bf16.mxu0 %v859
    %1985 = vmatpush1.bf16.msra.mxu0 %v858
    %1986 = vmatprep.subr.bf16.mxu0 %v855
    %1987 = vmatpush1.bf16.msra.mxu0 %v854
    %1988 = vmatprep.subr.bf16.mxu0 %v851
    %1989 = vmatpush1.bf16.msra.mxu0 %v850
    %1990 = vmatprep.subr.bf16.mxu0 %v847
    %1991 = vmatpush1.bf16.msra.mxu0 %v846
    %1992 = vmatprep.subr.bf16.mxu0 %v843
    %1993 = vmatpush1.bf16.msra.mxu0 %v842
    %1994 = vmatprep.subr.bf16.mxu0 %v839
    %1995 = vmatpush1.bf16.msra.mxu0 %v838
    %1996 = vmatprep.subr.bf16.mxu0 %v835
    %1997 = vmatpush1.bf16.msra.mxu0 %v834
    %1998 = vmatprep.subr.bf16.mxu0 %v831
    %1999 = vmatpush1.bf16.msra.mxu0 %v830
    %2000 = vmatprep.subr.bf16.mxu0 0
    %2001 = vmatpush2.bf16.msra.mxu0 0
    %2002 = vmatprep.subr.bf16.mxu0 0
    %2003 = vmatpush2.bf16.msra.mxu0 0
    %2004 = vmatprep.subr.bf16.mxu0 0
    %2005 = vmatpush2.bf16.msra.mxu0 0
    %2006 = vmatprep.subr.bf16.mxu0 0
    %2007 = vmatpush2.bf16.msra.mxu0 0
    %2008 = vmatprep.subr.bf16.mxu0 0
    %2009 = vmatpush2.bf16.msra.mxu0 0
    %2010 = vmatprep.subr.bf16.mxu0 0
    %2011 = vmatpush2.bf16.msra.mxu0 0
    %2012 = vmatprep.subr.bf16.mxu0 0
    %2013 = vmatpush2.bf16.msra.mxu0 0
    %2014 = vmatprep.subr.bf16.mxu0 %v863
    %2015 = vmatpush2.bf16.msra.mxu0 %v862
    %2016 = vmatprep.mubr.bf16.mxu0 %v1982
    %2017 = vmatmul.mubr.bf16.gmra.mxu0 %v1892
    %v2018 = vpop.f32.mrf.mxu0
    %v2019 = vadd.f32 %v1934, %v2018
    %v2020 = vpop.f32.mrf.mxu0
    %v2021 = vadd.f32 %v1936, %v2020
    %v2022 = vpop.f32.mrf.mxu0
    %v2023 = vpop.f32.mrf.mxu0
    %2024 = vdwg.mxu0
    %2025 = vmatprep.subr.bf16.mxu0 %v861
    %2026 = vmatpush1.bf16.msra.mxu0 %v860
    %2027 = vmatprep.subr.bf16.mxu0 %v857
    %2028 = vmatpush1.bf16.msra.mxu0 %v856
    %2029 = vmatprep.subr.bf16.mxu0 %v853
    %2030 = vmatpush1.bf16.msra.mxu0 %v852
    %2031 = vmatprep.subr.bf16.mxu0 %v849
    %2032 = vmatpush1.bf16.msra.mxu0 %v848
    %2033 = vmatprep.subr.bf16.mxu0 %v845
    %2034 = vmatpush1.bf16.msra.mxu0 %v844
    %2035 = vmatprep.subr.bf16.mxu0 %v841
    %2036 = vmatpush1.bf16.msra.mxu0 %v840
    %2037 = vmatprep.subr.bf16.mxu0 %v837
    %2038 = vmatpush1.bf16.msra.mxu0 %v836
    %2039 = vmatprep.subr.bf16.mxu0 %v833
    %2040 = vmatpush1.bf16.msra.mxu0 %v832
    %2041 = vmatprep.subr.bf16.mxu0 0
    %2042 = vmatpush2.bf16.msra.mxu0 0
    %2043 = vmatprep.subr.bf16.mxu0 0
    %2044 = vmatpush2.bf16.msra.mxu0 0
    %2045 = vmatprep.subr.bf16.mxu0 0
    %2046 = vmatpush2.bf16.msra.mxu0 0
    %2047 = vmatprep.subr.bf16.mxu0 0
    %2048 = vmatpush2.bf16.msra.mxu0 0
    %2049 = vmatprep.subr.bf16.mxu0 0
    %2050 = vmatpush2.bf16.msra.mxu0 0
    %2051 = vmatprep.subr.bf16.mxu0 0
    %2052 = vmatpush2.bf16.msra.mxu0 0
    %2053 = vmatprep.subr.bf16.mxu0 0
    %2054 = vmatpush2.bf16.msra.mxu0 0
    %2055 = vmatprep.subr.bf16.mxu0 %v865
    %2056 = vmatpush2.bf16.msra.mxu0 %v864
    %2057 = vmatprep.mubr.bf16.mxu0 %v1982
    %2058 = vmatmul.mubr.bf16.gmra.mxu0 %v1892
    %v2059 = vpop.f32.mrf.mxu0
    %v2060 = vadd.f32 %v1975, %v2059
    %v2061 = vpop.f32.mrf.mxu0
    %v2062 = vadd.f32 %v1977, %v2061
    %v2063 = vpop.f32.mrf.mxu0
    %v2064 = vpop.f32.mrf.mxu0
    %2065 = vdwg.mxu0
    %v2066 = vadd.f32 %v2019, %v992
    %v2067 = vadd.f32 %v2021, %v996
    %v2068 = vadd.f32 %v2060, %v1000
    %v2069 = vadd.f32 %v2062, %v1004
    %v2070 = vmax.f32 %v2066, 0.0
    %v2071 = vmax.f32 %v2067, 0.0
    %v2072 = vmax.f32 %v2068, 0.0
    %v2073 = vmax.f32 %v2069, 0.0
    %v2074 = vmul.f32 %v2070, 1.050701
    %v2075 = vmul.f32 %v2071, 1.050701
    %v2076 = vmul.f32 %v2072, 1.050701
    %v2077 = vmul.f32 %v2073, 1.050701
    %v2078 = vmul.f32 %v2074, -1.1411982
    %v2079 = vmul.f32 %v2075, -0.1504301
    %v2080 = vadd.f32 %v2078, %v2079
    %v2081 = vmul.f32 %v2076, -0.63319045
    %v2082 = vadd.f32 %v2080, %v2081
    %v2083 = vmul.f32 %v2077, 0.2735814
    %v2084 = vadd.f32 %v2082, %v2083
    %v2085 = vadd.f32 %v2084, 0.1
    %v2086 = vmax.f32 %v2085, 0.0
    %v2087 = vmul.f32 %v2074, -0.36119378
    %v2088 = vmul.f32 %v2075, -0.834833
    %v2089 = vadd.f32 %v2087, %v2088
    %v2090 = vmul.f32 %v2076, -0.019927844
    %v2091 = vadd.f32 %v2089, %v2090
    %v2092 = vmul.f32 %v2077, 0.30287638
    %v2093 = vadd.f32 %v2091, %v2092
    %v2094 = vadd.f32 %v2093, 0.1
    %v2095 = vmax.f32 %v2094, 0.0
    %v2096 = vpack.c.bf16 %v2086, %v2086
    %v2097 = vpack.c.bf16 %v2095, %v2095
    %2098 = vmatprep.subr.bf16.mxu0 %v1230
    %2099 = vmatpush1.bf16.msra.mxu0 %v1229
    %2100 = vmatprep.subr.bf16.mxu0 %v1226
    %2101 = vmatpush1.bf16.msra.mxu0 %v1225
    %2102 = vmatprep.subr.bf16.mxu0 %v1222
    %2103 = vmatpush1.bf16.msra.mxu0 %v1221
    %2104 = vmatprep.subr.bf16.mxu0 %v1218
    %2105 = vmatpush1.bf16.msra.mxu0 %v1217
    %2106 = vmatprep.subr.bf16.mxu0 %v1214
    %2107 = vmatpush1.bf16.msra.mxu0 %v1213
    %2108 = vmatprep.subr.bf16.mxu0 %v1210
    %2109 = vmatpush1.bf16.msra.mxu0 %v1209
    %2110 = vmatprep.subr.bf16.mxu0 %v1206
    %2111 = vmatpush1.bf16.msra.mxu0 %v1205
    %2112 = vmatprep.subr.bf16.mxu0 %v1202
    %2113 = vmatpush1.bf16.msra.mxu0 %v1201
    %2114 = vmatprep.subr.bf16.mxu0 0
    %2115 = vmatpush2.bf16.msra.mxu0 0
    %2116 = vmatprep.subr.bf16.mxu0 0
    %2117 = vmatpush2.bf16.msra.mxu0 0
    %2118 = vmatprep.subr.bf16.mxu0 0
    %2119 = vmatpush2.bf16.msra.mxu0 0
    %2120 = vmatprep.subr.bf16.mxu0 0
    %2121 = vmatpush2.bf16.msra.mxu0 0
    %2122 = vmatprep.subr.bf16.mxu0 0
    %2123 = vmatpush2.bf16.msra.mxu0 0
    %2124 = vmatprep.subr.bf16.mxu0 0
    %2125 = vmatpush2.bf16.msra.mxu0 0
    %2126 = vmatprep.subr.bf16.mxu0 0
    %2127 = vmatpush2.bf16.msra.mxu0 0
    %2128 = vmatprep.subr.bf16.mxu0 0
    %2129 = vmatpush2.bf16.msra.mxu0 0
    %2130 = vmatprep.mubr.bf16.mxu0 0
    %2131 = vmatmul.mubr.bf16.gmra.mxu0 %v2097
    %v2132 = vpop.f32.mrf.mxu0
    %v2133 = vadd.f32 0.0, %v2132
    %v2134 = vpop.f32.mrf.mxu0
    %v2135 = vadd.f32 0.0, %v2134
    %v2136 = vpop.f32.mrf.mxu0
    %v2137 = vpop.f32.mrf.mxu0
    %2138 = vdwg.mxu0
    %2139 = vmatprep.subr.bf16.mxu0 %v1232
    %2140 = vmatpush1.bf16.msra.mxu0 %v1231
    %2141 = vmatprep.subr.bf16.mxu0 %v1228
    %2142 = vmatpush1.bf16.msra.mxu0 %v1227
    %2143 = vmatprep.subr.bf16.mxu0 %v1224
    %2144 = vmatpush1.bf16.msra.mxu0 %v1223
    %2145 = vmatprep.subr.bf16.mxu0 %v1220
    %2146 = vmatpush1.bf16.msra.mxu0 %v1219
    %2147 = vmatprep.subr.bf16.mxu0 %v1216
    %2148 = vmatpush1.bf16.msra.mxu0 %v1215
    %2149 = vmatprep.subr.bf16.mxu0 %v1212
    %2150 = vmatpush1.bf16.msra.mxu0 %v1211
    %2151 = vmatprep.subr.bf16.mxu0 %v1208
    %2152 = vmatpush1.bf16.msra.mxu0 %v1207
    %2153 = vmatprep.subr.bf16.mxu0 %v1204
    %2154 = vmatpush1.bf16.msra.mxu0 %v1203
    %2155 = vmatprep.subr.bf16.mxu0 0
    %2156 = vmatpush2.bf16.msra.mxu0 0
    %2157 = vmatprep.subr.bf16.mxu0 0
    %2158 = vmatpush2.bf16.msra.mxu0 0
    %2159 = vmatprep.subr.bf16.mxu0 0
    %2160 = vmatpush2.bf16.msra.mxu0 0
    %2161 = vmatprep.subr.bf16.mxu0 0
    %2162 = vmatpush2.bf16.msra.mxu0 0
    %2163 = vmatprep.subr.bf16.mxu0 0
    %2164 = vmatpush2.bf16.msra.mxu0 0
    %2165 = vmatprep.subr.bf16.mxu0 0
    %2166 = vmatpush2.bf16.msra.mxu0 0
    %2167 = vmatprep.subr.bf16.mxu0 0
    %2168 = vmatpush2.bf16.msra.mxu0 0
    %2169 = vmatprep.subr.bf16.mxu0 0
    %2170 = vmatpush2.bf16.msra.mxu0 0
    %2171 = vmatprep.mubr.bf16.mxu0 0
    %2172 = vmatmul.mubr.bf16.gmra.mxu0 %v2097
    %v2173 = vpop.f32.mrf.mxu0
    %v2174 = vadd.f32 0.0, %v2173
    %v2175 = vpop.f32.mrf.mxu0
    %v2176 = vadd.f32 0.0, %v2175
    %v2177 = vpop.f32.mrf.mxu0
    %v2178 = vpop.f32.mrf.mxu0
    %2179 = vdwg.mxu0
    %2180 = vmatprep.subr.bf16.mxu0 %v1472
    %2181 = vmatpush1.bf16.msra.mxu0 %v1471
    %2182 = vmatprep.subr.bf16.mxu0 %v1468
    %2183 = vmatpush1.bf16.msra.mxu0 %v1467
    %2184 = vmatprep.subr.bf16.mxu0 %v1464
    %2185 = vmatpush1.bf16.msra.mxu0 %v1463
    %2186 = vmatprep.subr.bf16.mxu0 %v1460
    %2187 = vmatpush1.bf16.msra.mxu0 %v1459
    %2188 = vmatprep.subr.bf16.mxu0 %v1456
    %2189 = vmatpush1.bf16.msra.mxu0 %v1455
    %2190 = vmatprep.subr.bf16.mxu0 %v1452
    %2191 = vmatpush1.bf16.msra.mxu0 %v1451
    %2192 = vmatprep.subr.bf16.mxu0 %v1448
    %2193 = vmatpush1.bf16.msra.mxu0 %v1447
    %2194 = vmatprep.subr.bf16.mxu0 %v1444
    %2195 = vmatpush1.bf16.msra.mxu0 %v1443
    %2196 = vmatprep.subr.bf16.mxu0 0
    %2197 = vmatpush2.bf16.msra.mxu0 0
    %2198 = vmatprep.subr.bf16.mxu0 0
    %2199 = vmatpush2.bf16.msra.mxu0 0
    %2200 = vmatprep.subr.bf16.mxu0 0
    %2201 = vmatpush2.bf16.msra.mxu0 0
    %2202 = vmatprep.subr.bf16.mxu0 0
    %2203 = vmatpush2.bf16.msra.mxu0 0
    %2204 = vmatprep.subr.bf16.mxu0 0
    %2205 = vmatpush2.bf16.msra.mxu0 0
    %2206 = vmatprep.subr.bf16.mxu0 0
    %2207 = vmatpush2.bf16.msra.mxu0 0
    %2208 = vmatprep.subr.bf16.mxu0 0
    %2209 = vmatpush2.bf16.msra.mxu0 0
    %2210 = vmatprep.subr.bf16.mxu0 0
    %2211 = vmatpush2.bf16.msra.mxu0 0
    %2212 = vmatprep.mubr.bf16.mxu0 0
    %2213 = vmatmul.mubr.bf16.gmra.mxu0 %v2096
    %v2214 = vpop.f32.mrf.mxu0
    %v2215 = vadd.f32 %v2133, %v2214
    %v2216 = vpop.f32.mrf.mxu0
    %v2217 = vadd.f32 %v2135, %v2216
    %v2218 = vpop.f32.mrf.mxu0
    %v2219 = vpop.f32.mrf.mxu0
    %2220 = vdwg.mxu0
    %2221 = vmatprep.subr.bf16.mxu0 %v1474
    %2222 = vmatpush1.bf16.msra.mxu0 %v1473
    %2223 = vmatprep.subr.bf16.mxu0 %v1470
    %2224 = vmatpush1.bf16.msra.mxu0 %v1469
    %2225 = vmatprep.subr.bf16.mxu0 %v1466
    %2226 = vmatpush1.bf16.msra.mxu0 %v1465
    %2227 = vmatprep.subr.bf16.mxu0 %v1462
    %2228 = vmatpush1.bf16.msra.mxu0 %v1461
    %2229 = vmatprep.subr.bf16.mxu0 %v1458
    %2230 = vmatpush1.bf16.msra.mxu0 %v1457
    %2231 = vmatprep.subr.bf16.mxu0 %v1454
    %2232 = vmatpush1.bf16.msra.mxu0 %v1453
    %2233 = vmatprep.subr.bf16.mxu0 %v1450
    %2234 = vmatpush1.bf16.msra.mxu0 %v1449
    %2235 = vmatprep.subr.bf16.mxu0 %v1446
    %2236 = vmatpush1.bf16.msra.mxu0 %v1445
    %2237 = vmatprep.subr.bf16.mxu0 0
    %2238 = vmatpush2.bf16.msra.mxu0 0
    %2239 = vmatprep.subr.bf16.mxu0 0
    %2240 = vmatpush2.bf16.msra.mxu0 0
    %2241 = vmatprep.subr.bf16.mxu0 0
    %2242 = vmatpush2.bf16.msra.mxu0 0
    %2243 = vmatprep.subr.bf16.mxu0 0
    %2244 = vmatpush2.bf16.msra.mxu0 0
    %2245 = vmatprep.subr.bf16.mxu0 0
    %2246 = vmatpush2.bf16.msra.mxu0 0
    %2247 = vmatprep.subr.bf16.mxu0 0
    %2248 = vmatpush2.bf16.msra.mxu0 0
    %2249 = vmatprep.subr.bf16.mxu0 0
    %2250 = vmatpush2.bf16.msra.mxu0 0
    %2251 = vmatprep.subr.bf16.mxu0 0
    %2252 = vmatpush2.bf16.msra.mxu0 0
    %2253 = vmatprep.mubr.bf16.mxu0 0
    %2254 = vmatmul.mubr.bf16.gmra.mxu0 %v2096
    %v2255 = vpop.f32.mrf.mxu0
    %v2256 = vadd.f32 %v2174, %v2255
    %v2257 = vpop.f32.mrf.mxu0
    %v2258 = vadd.f32 %v2176, %v2257
    %v2259 = vpop.f32.mrf.mxu0
    %v2260 = vpop.f32.mrf.mxu0
    %2261 = vdwg.mxu0
    %v2262 = vadd.f32 %v2215, %v1595
    %v2263 = vadd.f32 %v2217, %v1599
    %v2264 = vadd.f32 %v2256, %v1603
    %v2265 = vadd.f32 %v2258, %v1607
    %v2266 = vmax.f32 %v2262, 0.0
    %v2267 = vmax.f32 %v2263, 0.0
    %v2268 = vmax.f32 %v2264, 0.0
    %v2269 = vmax.f32 %v2265, 0.0
    %v2271 = vrot.slane %v2267, 6
    %v2274 = vrot.slane %v2268, 4
    %v2277 = vrot.slane %v2269, 2
    %v2279 = vsel %vm1629, %v2266, %v2271
    %v2280 = vsel %vm1631, %v2279, %v2274
    %v2281 = vsel %vm1633, %v2280, %v2277
    %v2282 = vpack.c.bf16 %v2281, %v2281
    %2283 = vmatprep.subr.bf16.mxu0 %v1715
    %2284 = vmatpush1.bf16.msra.mxu0 %v1714
    %2285 = vmatprep.subr.bf16.mxu0 %v1713
    %2286 = vmatpush1.bf16.msra.mxu0 %v1712
    %2287 = vmatprep.subr.bf16.mxu0 %v1711
    %2288 = vmatpush1.bf16.msra.mxu0 %v1710
    %2289 = vmatprep.subr.bf16.mxu0 %v1709
    %2290 = vmatpush1.bf16.msra.mxu0 %v1708
    %2291 = vmatprep.subr.bf16.mxu0 %v1707
    %2292 = vmatpush1.bf16.msra.mxu0 %v1706
    %2293 = vmatprep.subr.bf16.mxu0 %v1705
    %2294 = vmatpush1.bf16.msra.mxu0 %v1704
    %2295 = vmatprep.subr.bf16.mxu0 %v1703
    %2296 = vmatpush1.bf16.msra.mxu0 %v1702
    %2297 = vmatprep.subr.bf16.mxu0 %v1701
    %2298 = vmatpush1.bf16.msra.mxu0 %v1700
    %2299 = vmatprep.subr.bf16.mxu0 0
    %2300 = vmatpush2.bf16.msra.mxu0 0
    %2301 = vmatprep.subr.bf16.mxu0 0
    %2302 = vmatpush2.bf16.msra.mxu0 0
    %2303 = vmatprep.subr.bf16.mxu0 0
    %2304 = vmatpush2.bf16.msra.mxu0 0
    %2305 = vmatprep.subr.bf16.mxu0 0
    %2306 = vmatpush2.bf16.msra.mxu0 0
    %2307 = vmatprep.subr.bf16.mxu0 0
    %2308 = vmatpush2.bf16.msra.mxu0 0
    %2309 = vmatprep.subr.bf16.mxu0 0
    %2310 = vmatpush2.bf16.msra.mxu0 0
    %2311 = vmatprep.subr.bf16.mxu0 0
    %2312 = vmatpush2.bf16.msra.mxu0 0
    %2313 = vmatprep.subr.bf16.mxu0 0
    %2314 = vmatpush2.bf16.msra.mxu0 0
    %2315 = vmatprep.mubr.bf16.mxu0 0
    %2316 = vmatmul.mubr.bf16.gmra.mxu0 %v2282
    %v2317 = vpop.f32.mrf.mxu0
    %v2318 = vadd.f32 0.0, %v2317
    %v2319 = vpop.f32.mrf.mxu0
    %v2320 = vadd.f32 0.0, %v2319
    %v2321 = vpop.f32.mrf.mxu0
    %v2322 = vpop.f32.mrf.mxu0
    %2323 = vdwg.mxu0
    %v2324 = vmax.f32 %v2318, 1e-06
    %v2325 = vmax.f32 %v2320, 1e-06
    %v2326 = vrcp.pop %v2324
    %v2327 = vrcp.pop %v2325
    %v2328 = vmul.f32 %v1773, %v2326
    %v2329 = vmul.f32 %v1774, %v2327
    %2330 = vst [vmem:[%s8] sm:$0xff] %v2328
    %2331 = vst [vmem:[%s8 + $0x8] sm:$0xff] %v2329
    // Predicated region
    $region46: #{_spatial_normalization_fused.1} parent=1 // pred_check
      _
    $region47: #{_spatial_normalization_fused.1} parent=1 // pred_check_branch
      %2333 = sbr.rel (0) target = $region49
    $region48: #{_spatial_normalization_fused.1} parent=1 // pred_region
      _
    $region49: #{_spatial_normalization_fused.1} parent=1 // pred_fallthru
      _
    // Predicated region
    $region50: #{_spatial_normalization_fused.1} parent=1 // pred_check
      _
    $region51: #{_spatial_normalization_fused.1} parent=1 // pred_check_branch
      %2335 = sbr.rel (0) target = $region53
    $region52: #{_spatial_normalization_fused.1} parent=1 // pred_region
      _
    $region53: #{_spatial_normalization_fused.1} parent=1 // pred_fallthru
      _
    %2336 = vsyncpa [#allocation3], 1
    %2337 = vsyncpa [#allocation5], 1

</llo_original>
